<compile_context>
chip_gen: v6e
topology: v6e:2x2x1
jax: 0.10.0
libtpu: 0.0.40
codegen_flags: <defaults>
</compile_context>

<pallas_src>
import jax
import jax.numpy as jnp
from jax.experimental import pallas as pl
from jax.experimental.pallas import tpu as pltpu

KSIZE = 7
PAD = 3


def sam_kernel(w_ref, b_ref, x_ref, o_ref, mp_ref, ap_ref):
    """One grid step handles TB batch elements.

    w_ref : SMEM (2, 49) f32   conv weight; row 0 -> max map, row 1 -> avg map
    b_ref : SMEM (1,)    f32   conv bias (0.0 when bias=False)
    x_ref : VMEM (TB, C, H, W)
    o_ref : VMEM (TB, C, H, W)
    mp_ref, ap_ref : VMEM (TB, H+6, W+6) f32 scratch (zero-padded pooled maps)
    """
    tb, c, h, w = x_ref.shape

    # ---- zero the padded scratch border once (scratch persists over grid) --
    @pl.when(pl.program_id(0) == 0)
    def _():
        mp_ref[...] = jnp.zeros(mp_ref.shape, jnp.float32)
        ap_ref[...] = jnp.zeros(ap_ref.shape, jnp.float32)

    # ---- channel-wise max & mean (one channel slab at a time) -------------
    x0 = x_ref[:, 0].astype(jnp.float32)              # (TB, H, W)
    mx = x0
    sm = x0
    for ci in range(1, c):
        xc = x_ref[:, ci].astype(jnp.float32)
        mx = jnp.maximum(mx, xc)
        sm = sm + xc
    av = sm * (1.0 / c)

    # interior of the zero-padded pooled maps (border stays zero)
    mp_ref[:, PAD:PAD + h, PAD:PAD + w] = mx
    ap_ref[:, PAD:PAD + h, PAD:PAD + w] = av

    # ---- 7x7 conv: 49 unrolled taps, both input channels fused per tap ----
    acc = jnp.full((tb, h, w), b_ref[0], dtype=jnp.float32)
    for ki in range(KSIZE):
        for kj in range(KSIZE):
            tap = ki * KSIZE + kj
            acc = acc + (w_ref[0, tap] * mp_ref[:, ki:ki + h, kj:kj + w]
                         + w_ref[1, tap] * ap_ref[:, ki:ki + h, kj:kj + w])

    # sigmoid: exp lands on the EUP; exact reciprocal keeps 1e-5-level accuracy.
    att = pl.reciprocal(1.0 + jnp.exp(-acc), approx=False)   # (TB, H, W)

    # ---- broadcast multiply, one lane-dense store per channel slab --------
    for ci in range(c):
        o_ref[:, ci] = (x_ref[:, ci].astype(jnp.float32) * att).astype(o_ref.dtype)


def _choose_batch_tile(B, per_elem_bytes, budget_bytes):
    """Largest divisor of B whose in+out double-buffered blocks fit the budget,
    while keeping >= 2 grid steps (megacore) whenever B >= 2."""
    cap = max(1, budget_bytes // (4 * max(1, per_elem_bytes)))  # 2 bufs x (in+out)
    if B >= 2:
        cap = min(cap, B // 2)
    cap = max(1, min(cap, B))
    tb = 1
    for d in range(1, cap + 1):
        if B % d == 0:
            tb = d
    return tb


def sam_forward(x_nchw, conv_weight, conv_bias=None, *,
                vmem_block_budget_bytes=32 << 20):
    """x_nchw: (B, C, H, W). conv_weight: (1, 2, 7, 7). Returns (B, C, H, W)."""
    B, C, H, W = x_nchw.shape
    assert conv_weight.shape == (1, 2, KSIZE, KSIZE)

    w2d = conv_weight.reshape(2, KSIZE * KSIZE).astype(jnp.float32)
    b1 = (jnp.zeros((1,), jnp.float32) if conv_bias is None
          else jnp.asarray(conv_bias, jnp.float32).reshape(1))

    per_elem_bytes = C * H * W * x_nchw.dtype.itemsize
    tb = _choose_batch_tile(B, per_elem_bytes, vmem_block_budget_bytes)
    grid = (B // tb,)

    cost = pl.CostEstimate(
        flops=int(B * H * W * (3 * C + 4 * KSIZE * KSIZE + 4)),
        transcendentals=int(B * H * W),
        bytes_accessed=int(2 * B * per_elem_bytes + w2d.size * 4 + 4),
    )

    out = pl.pallas_call(
        sam_kernel,
        out_shape=jax.ShapeDtypeStruct((B, C, H, W), x_nchw.dtype),
        grid_spec=pltpu.PrefetchScalarGridSpec(
            num_scalar_prefetch=0,
            grid=grid,
            in_specs=[
                pl.BlockSpec(memory_space=pltpu.MemorySpace.SMEM),    # conv weights
                pl.BlockSpec(memory_space=pltpu.MemorySpace.SMEM),    # conv bias
                pl.BlockSpec((tb, C, H, W), lambda i: (i, 0, 0, 0)),  # x
            ],
            out_specs=pl.BlockSpec((tb, C, H, W), lambda i: (i, 0, 0, 0)),
            scratch_shapes=[
                pltpu.VMEM((tb, H + 2 * PAD, W + 2 * PAD), jnp.float32),
                pltpu.VMEM((tb, H + 2 * PAD, W + 2 * PAD), jnp.float32),
            ],
        ),
        compiler_params=pltpu.CompilerParams(
            dimension_semantics=("parallel",),
            vmem_limit_bytes=48 << 20,   # safe on v7x (64 MiB), headroom on v5e/v6e
        ),
        cost_estimate=cost,
    )(w2d, b1, x_nchw)
    return out


def sam_reference(x, conv_weight, conv_bias=None):
    """Pure-JAX reference mirroring the PyTorch SAM.forward."""
    mx = jnp.max(x, axis=1, keepdims=True)
    av = jnp.mean(x, axis=1, keepdims=True)
    cat = jnp.concatenate([mx, av], axis=1)
    out = jax.lax.conv_general_dilated(
        cat, conv_weight, window_strides=(1, 1),
        padding=((PAD, PAD), (PAD, PAD)),
        dimension_numbers=("NCHW", "OIHW", "NCHW"),
        precision=jax.lax.Precision.HIGHEST)
    if conv_bias is not None:
        out = out + jnp.asarray(conv_bias).reshape(1, 1, 1, 1)
    att = jax.nn.sigmoid(out)
    return att * x


if __name__ == "__main__":
    # Small shapes consistent with the module (NCHW input; 7x7, 2->1 conv).
    B, C, H, W = 2, 4, 16, 16

    key = jax.random.PRNGKey(0)
    kx, kw = jax.random.split(key)
    x = jax.random.normal(kx, (B, C, H, W), dtype=jnp.float32)
    conv_w = jax.random.normal(kw, (1, 2, KSIZE, KSIZE), dtype=jnp.float32) * 0.1

    out = sam_forward(x, conv_w)          # bias=False, matching SAM()
    out = jax.block_until_ready(out)

    ref = sam_reference(x, conv_w)
    assert out.shape == (B, C, H, W)
    assert jnp.allclose(out, ref, atol=1e-4, rtol=1e-4), float(
        jnp.max(jnp.abs(out - ref)))

    print("KERNEL_OK")
</pallas_src>

<mosaic_0001>
module attributes {stable_mosaic.version = 11 : i64} {
  func.func @sam_kernel(%arg0: i32, %arg1: memref<2x49xf32, #tpu.memory_space<smem>>, %arg2: memref<1xf32, #tpu.memory_space<smem>>, %arg3: memref<1x4x16x16xf32, #tpu.memory_space<vmem>>, %arg4: memref<1x4x16x16xf32, #tpu.memory_space<vmem>>, %arg5: memref<1x22x22xf32, #tpu.memory_space<vmem>>, %arg6: memref<1x22x22xf32, #tpu.memory_space<vmem>>) attributes {dimension_semantics = [#tpu.dimension_semantics<parallel>], iteration_bounds = array<i64: 2>, scalar_prefetch = 0 : i64, scratch_operands = 2 : i64, tpu.core_type = #tpu.core_type<tc>, window_params = [{transform_indices = @transform_0, window_bounds = array<i64: 2, 49>}, {transform_indices = @transform_1, window_bounds = array<i64: 1>}, {transform_indices = @transform_2, window_bounds = array<i64: 1, 4, 16, 16>}, {transform_indices = @transform_3, window_bounds = array<i64: 1, 4, 16, 16>}]} {
    %c0_i32 = arith.constant 0 : i32
    %0 = arith.cmpi eq, %arg0, %c0_i32 : i32
    %1 = arith.extui %0 : i1 to i32
    %c0_i32_0 = arith.constant 0 : i32
    %2 = arith.cmpi ne, %1, %c0_i32_0 : i32
    scf.if %2 {
      %cst_499 = arith.constant 0.000000e+00 : f32
      %543 = vector.broadcast %cst_499 : f32 to vector<1x22x22xf32>
      %c0_500 = arith.constant 0 : index
      %c0_501 = arith.constant 0 : index
      %c0_502 = arith.constant 0 : index
      %544 = vector.load %arg5[%c0_500, %c0_501, %c0_502] : memref<1x22x22xf32, #tpu.memory_space<vmem>>, vector<1x22x22xf32>
      tpu.vector_store %arg5[%c0_500, %c0_501, %c0_502], %543 {strides = array<i32>} : memref<1x22x22xf32, #tpu.memory_space<vmem>>, vector<1x22x22xf32>,
      %cst_503 = arith.constant 0.000000e+00 : f32
      %545 = vector.broadcast %cst_503 : f32 to vector<1x22x22xf32>
      %c0_504 = arith.constant 0 : index
      %c0_505 = arith.constant 0 : index
      %c0_506 = arith.constant 0 : index
      %546 = vector.load %arg6[%c0_504, %c0_505, %c0_506] : memref<1x22x22xf32, #tpu.memory_space<vmem>>, vector<1x22x22xf32>
      tpu.vector_store %arg6[%c0_504, %c0_505, %c0_506], %545 {strides = array<i32>} : memref<1x22x22xf32, #tpu.memory_space<vmem>>, vector<1x22x22xf32>,
    } else {
    }
    %c0 = arith.constant 0 : index
    %c0_1 = arith.constant 0 : index
    %c0_2 = arith.constant 0 : index
    %c0_3 = arith.constant 0 : index
    %3 = vector.load %arg3[%c0, %c0_1, %c0_2, %c0_3] : memref<1x4x16x16xf32, #tpu.memory_space<vmem>>, vector<1x1x16x16xf32>
    %4 = vector.shape_cast %3 : vector<1x1x16x16xf32> to vector<1x16x16xf32>
    %c0_4 = arith.constant 0 : index
    %c1 = arith.constant 1 : index
    %c0_5 = arith.constant 0 : index
    %c0_6 = arith.constant 0 : index
    %5 = vector.load %arg3[%c0_4, %c1, %c0_5, %c0_6] : memref<1x4x16x16xf32, #tpu.memory_space<vmem>>, vector<1x1x16x16xf32>
    %6 = vector.shape_cast %5 : vector<1x1x16x16xf32> to vector<1x16x16xf32>
    %7 = arith.maximumf %4, %6 : vector<1x16x16xf32>
    %8 = arith.addf %4, %6 : vector<1x16x16xf32>
    %c0_7 = arith.constant 0 : index
    %c2 = arith.constant 2 : index
    %c0_8 = arith.constant 0 : index
    %c0_9 = arith.constant 0 : index
    %9 = vector.load %arg3[%c0_7, %c2, %c0_8, %c0_9] : memref<1x4x16x16xf32, #tpu.memory_space<vmem>>, vector<1x1x16x16xf32>
    %10 = vector.shape_cast %9 : vector<1x1x16x16xf32> to vector<1x16x16xf32>
    %11 = arith.maximumf %7, %10 : vector<1x16x16xf32>
    %12 = arith.addf %8, %10 : vector<1x16x16xf32>
    %c0_10 = arith.constant 0 : index
    %c3 = arith.constant 3 : index
    %c0_11 = arith.constant 0 : index
    %c0_12 = arith.constant 0 : index
    %13 = vector.load %arg3[%c0_10, %c3, %c0_11, %c0_12] : memref<1x4x16x16xf32, #tpu.memory_space<vmem>>, vector<1x1x16x16xf32>
    %14 = vector.shape_cast %13 : vector<1x1x16x16xf32> to vector<1x16x16xf32>
    %15 = arith.maximumf %11, %14 : vector<1x16x16xf32>
    %16 = arith.addf %12, %14 : vector<1x16x16xf32>
    %cst = arith.constant 2.500000e-01 : f32
    %17 = vector.broadcast %cst : f32 to vector<1x16x16xf32>
    %18 = arith.mulf %16, %17 : vector<1x16x16xf32>
    %c0_13 = arith.constant 0 : index
    %c3_14 = arith.constant 3 : index
    %c3_15 = arith.constant 3 : index
    %19 = vector.load %arg5[%c0_13, %c3_14, %c3_15] : memref<1x22x22xf32, #tpu.memory_space<vmem>>, vector<1x16x16xf32>
    tpu.vector_store %arg5[%c0_13, %c3_14, %c3_15], %15 {strides = array<i32>} : memref<1x22x22xf32, #tpu.memory_space<vmem>>, vector<1x16x16xf32>,
    %c0_16 = arith.constant 0 : index
    %c3_17 = arith.constant 3 : index
    %c3_18 = arith.constant 3 : index
    %20 = vector.load %arg6[%c0_16, %c3_17, %c3_18] : memref<1x22x22xf32, #tpu.memory_space<vmem>>, vector<1x16x16xf32>
    tpu.vector_store %arg6[%c0_16, %c3_17, %c3_18], %18 {strides = array<i32>} : memref<1x22x22xf32, #tpu.memory_space<vmem>>, vector<1x16x16xf32>,
    %c0_19 = arith.constant 0 : index
    %21 = memref.load %arg2[%c0_19] : memref<1xf32, #tpu.memory_space<smem>>
    %22 = vector.broadcast %21 : f32 to vector<1x16x16xf32>
    %c0_20 = arith.constant 0 : index
    %c0_21 = arith.constant 0 : index
    %23 = memref.load %arg1[%c0_20, %c0_21] : memref<2x49xf32, #tpu.memory_space<smem>>
    %c0_22 = arith.constant 0 : index
    %c0_23 = arith.constant 0 : index
    %c0_24 = arith.constant 0 : index
    %24 = vector.load %arg5[%c0_22, %c0_23, %c0_24] : memref<1x22x22xf32, #tpu.memory_space<vmem>>, vector<1x16x16xf32>
    %25 = vector.broadcast %23 : f32 to vector<1x16x16xf32>
    %26 = arith.mulf %25, %24 : vector<1x16x16xf32>
    %c1_25 = arith.constant 1 : index
    %c0_26 = arith.constant 0 : index
    %27 = memref.load %arg1[%c1_25, %c0_26] : memref<2x49xf32, #tpu.memory_space<smem>>
    %c0_27 = arith.constant 0 : index
    %c0_28 = arith.constant 0 : index
    %c0_29 = arith.constant 0 : index
    %28 = vector.load %arg6[%c0_27, %c0_28, %c0_29] : memref<1x22x22xf32, #tpu.memory_space<vmem>>, vector<1x16x16xf32>
    %29 = vector.broadcast %27 : f32 to vector<1x16x16xf32>
    %30 = arith.mulf %29, %28 : vector<1x16x16xf32>
    %31 = arith.addf %26, %30 : vector<1x16x16xf32>
    %32 = arith.addf %22, %31 : vector<1x16x16xf32>
    %c0_30 = arith.constant 0 : index
    %c1_31 = arith.constant 1 : index
    %33 = memref.load %arg1[%c0_30, %c1_31] : memref<2x49xf32, #tpu.memory_space<smem>>
    %c0_32 = arith.constant 0 : index
    %c0_33 = arith.constant 0 : index
    %c1_34 = arith.constant 1 : index
    %34 = vector.load %arg5[%c0_32, %c0_33, %c1_34] : memref<1x22x22xf32, #tpu.memory_space<vmem>>, vector<1x16x16xf32>
    %35 = vector.broadcast %33 : f32 to vector<1x16x16xf32>
    %36 = arith.mulf %35, %34 : vector<1x16x16xf32>
    %c1_35 = arith.constant 1 : index
    %c1_36 = arith.constant 1 : index
    %37 = memref.load %arg1[%c1_35, %c1_36] : memref<2x49xf32, #tpu.memory_space<smem>>
    %c0_37 = arith.constant 0 : index
    %c0_38 = arith.constant 0 : index
    %c1_39 = arith.constant 1 : index
    %38 = vector.load %arg6[%c0_37, %c0_38, %c1_39] : memref<1x22x22xf32, #tpu.memory_space<vmem>>, vector<1x16x16xf32>
    %39 = vector.broadcast %37 : f32 to vector<1x16x16xf32>
    %40 = arith.mulf %39, %38 : vector<1x16x16xf32>
    %41 = arith.addf %36, %40 : vector<1x16x16xf32>
    %42 = arith.addf %32, %41 : vector<1x16x16xf32>
    %c0_40 = arith.constant 0 : index
    %c2_41 = arith.constant 2 : index
    %43 = memref.load %arg1[%c0_40, %c2_41] : memref<2x49xf32, #tpu.memory_space<smem>>
    %c0_42 = arith.constant 0 : index
    %c0_43 = arith.constant 0 : index
    %c2_44 = arith.constant 2 : index
    %44 = vector.load %arg5[%c0_42, %c0_43, %c2_44] : memref<1x22x22xf32, #tpu.memory_space<vmem>>, vector<1x16x16xf32>
    %45 = vector.broadcast %43 : f32 to vector<1x16x16xf32>
    %46 = arith.mulf %45, %44 : vector<1x16x16xf32>
    %c1_45 = arith.constant 1 : index
    %c2_46 = arith.constant 2 : index
    %47 = memref.load %arg1[%c1_45, %c2_46] : memref<2x49xf32, #tpu.memory_space<smem>>
    %c0_47 = arith.constant 0 : index
    %c0_48 = arith.constant 0 : index
    %c2_49 = arith.constant 2 : index
    %48 = vector.load %arg6[%c0_47, %c0_48, %c2_49] : memref<1x22x22xf32, #tpu.memory_space<vmem>>, vector<1x16x16xf32>
    %49 = vector.broadcast %47 : f32 to vector<1x16x16xf32>
    %50 = arith.mulf %49, %48 : vector<1x16x16xf32>
    %51 = arith.addf %46, %50 : vector<1x16x16xf32>
    %52 = arith.addf %42, %51 : vector<1x16x16xf32>
    %c0_50 = arith.constant 0 : index
    %c3_51 = arith.constant 3 : index
    %53 = memref.load %arg1[%c0_50, %c3_51] : memref<2x49xf32, #tpu.memory_space<smem>>
    %c0_52 = arith.constant 0 : index
    %c0_53 = arith.constant 0 : index
    %c3_54 = arith.constant 3 : index
    %54 = vector.load %arg5[%c0_52, %c0_53, %c3_54] : memref<1x22x22xf32, #tpu.memory_space<vmem>>, vector<1x16x16xf32>
    %55 = vector.broadcast %53 : f32 to vector<1x16x16xf32>
    %56 = arith.mulf %55, %54 : vector<1x16x16xf32>
    %c1_55 = arith.constant 1 : index
    %c3_56 = arith.constant 3 : index
    %57 = memref.load %arg1[%c1_55, %c3_56] : memref<2x49xf32, #tpu.memory_space<smem>>
    %c0_57 = arith.constant 0 : index
    %c0_58 = arith.constant 0 : index
    %c3_59 = arith.constant 3 : index
    %58 = vector.load %arg6[%c0_57, %c0_58, %c3_59] : memref<1x22x22xf32, #tpu.memory_space<vmem>>, vector<1x16x16xf32>
    %59 = vector.broadcast %57 : f32 to vector<1x16x16xf32>
    %60 = arith.mulf %59, %58 : vector<1x16x16xf32>
    %61 = arith.addf %56, %60 : vector<1x16x16xf32>
    %62 = arith.addf %52, %61 : vector<1x16x16xf32>
    %c0_60 = arith.constant 0 : index
    %c4 = arith.constant 4 : index
    %63 = memref.load %arg1[%c0_60, %c4] : memref<2x49xf32, #tpu.memory_space<smem>>
    %c0_61 = arith.constant 0 : index
    %c0_62 = arith.constant 0 : index
    %c4_63 = arith.constant 4 : index
    %64 = vector.load %arg5[%c0_61, %c0_62, %c4_63] : memref<1x22x22xf32, #tpu.memory_space<vmem>>, vector<1x16x16xf32>
    %65 = vector.broadcast %63 : f32 to vector<1x16x16xf32>
    %66 = arith.mulf %65, %64 : vector<1x16x16xf32>
    %c1_64 = arith.constant 1 : index
    %c4_65 = arith.constant 4 : index
    %67 = memref.load %arg1[%c1_64, %c4_65] : memref<2x49xf32, #tpu.memory_space<smem>>
    %c0_66 = arith.constant 0 : index
    %c0_67 = arith.constant 0 : index
    %c4_68 = arith.constant 4 : index
    %68 = vector.load %arg6[%c0_66, %c0_67, %c4_68] : memref<1x22x22xf32, #tpu.memory_space<vmem>>, vector<1x16x16xf32>
    %69 = vector.broadcast %67 : f32 to vector<1x16x16xf32>
    %70 = arith.mulf %69, %68 : vector<1x16x16xf32>
    %71 = arith.addf %66, %70 : vector<1x16x16xf32>
    %72 = arith.addf %62, %71 : vector<1x16x16xf32>
    %c0_69 = arith.constant 0 : index
    %c5 = arith.constant 5 : index
    %73 = memref.load %arg1[%c0_69, %c5] : memref<2x49xf32, #tpu.memory_space<smem>>
    %c0_70 = arith.constant 0 : index
    %c0_71 = arith.constant 0 : index
    %c5_72 = arith.constant 5 : index
    %74 = vector.load %arg5[%c0_70, %c0_71, %c5_72] : memref<1x22x22xf32, #tpu.memory_space<vmem>>, vector<1x16x16xf32>
    %75 = vector.broadcast %73 : f32 to vector<1x16x16xf32>
    %76 = arith.mulf %75, %74 : vector<1x16x16xf32>
    %c1_73 = arith.constant 1 : index
    %c5_74 = arith.constant 5 : index
    %77 = memref.load %arg1[%c1_73, %c5_74] : memref<2x49xf32, #tpu.memory_space<smem>>
    %c0_75 = arith.constant 0 : index
    %c0_76 = arith.constant 0 : index
    %c5_77 = arith.constant 5 : index
    %78 = vector.load %arg6[%c0_75, %c0_76, %c5_77] : memref<1x22x22xf32, #tpu.memory_space<vmem>>, vector<1x16x16xf32>
    %79 = vector.broadcast %77 : f32 to vector<1x16x16xf32>
    %80 = arith.mulf %79, %78 : vector<1x16x16xf32>
    %81 = arith.addf %76, %80 : vector<1x16x16xf32>
    %82 = arith.addf %72, %81 : vector<1x16x16xf32>
    %c0_78 = arith.constant 0 : index
    %c6 = arith.constant 6 : index
    %83 = memref.load %arg1[%c0_78, %c6] : memref<2x49xf32, #tpu.memory_space<smem>>
    %c0_79 = arith.constant 0 : index
    %c0_80 = arith.constant 0 : index
    %c6_81 = arith.constant 6 : index
    %84 = vector.load %arg5[%c0_79, %c0_80, %c6_81] : memref<1x22x22xf32, #tpu.memory_space<vmem>>, vector<1x16x16xf32>
    %85 = vector.broadcast %83 : f32 to vector<1x16x16xf32>
    %86 = arith.mulf %85, %84 : vector<1x16x16xf32>
    %c1_82 = arith.constant 1 : index
    %c6_83 = arith.constant 6 : index
    %87 = memref.load %arg1[%c1_82, %c6_83] : memref<2x49xf32, #tpu.memory_space<smem>>
    %c0_84 = arith.constant 0 : index
    %c0_85 = arith.constant 0 : index
    %c6_86 = arith.constant 6 : index
    %88 = vector.load %arg6[%c0_84, %c0_85, %c6_86] : memref<1x22x22xf32, #tpu.memory_space<vmem>>, vector<1x16x16xf32>
    %89 = vector.broadcast %87 : f32 to vector<1x16x16xf32>
    %90 = arith.mulf %89, %88 : vector<1x16x16xf32>
    %91 = arith.addf %86, %90 : vector<1x16x16xf32>
    %92 = arith.addf %82, %91 : vector<1x16x16xf32>
    %c0_87 = arith.constant 0 : index
    %c7 = arith.constant 7 : index
    %93 = memref.load %arg1[%c0_87, %c7] : memref<2x49xf32, #tpu.memory_space<smem>>
    %c0_88 = arith.constant 0 : index
    %c1_89 = arith.constant 1 : index
    %c0_90 = arith.constant 0 : index
    %94 = vector.load %arg5[%c0_88, %c1_89, %c0_90] : memref<1x22x22xf32, #tpu.memory_space<vmem>>, vector<1x16x16xf32>
    %95 = vector.broadcast %93 : f32 to vector<1x16x16xf32>
    %96 = arith.mulf %95, %94 : vector<1x16x16xf32>
    %c1_91 = arith.constant 1 : index
    %c7_92 = arith.constant 7 : index
    %97 = memref.load %arg1[%c1_91, %c7_92] : memref<2x49xf32, #tpu.memory_space<smem>>
    %c0_93 = arith.constant 0 : index
    %c1_94 = arith.constant 1 : index
    %c0_95 = arith.constant 0 : index
    %98 = vector.load %arg6[%c0_93, %c1_94, %c0_95] : memref<1x22x22xf32, #tpu.memory_space<vmem>>, vector<1x16x16xf32>
    %99 = vector.broadcast %97 : f32 to vector<1x16x16xf32>
    %100 = arith.mulf %99, %98 : vector<1x16x16xf32>
    %101 = arith.addf %96, %100 : vector<1x16x16xf32>
    %102 = arith.addf %92, %101 : vector<1x16x16xf32>
    %c0_96 = arith.constant 0 : index
    %c8 = arith.constant 8 : index
    %103 = memref.load %arg1[%c0_96, %c8] : memref<2x49xf32, #tpu.memory_space<smem>>
    %c0_97 = arith.constant 0 : index
    %c1_98 = arith.constant 1 : index
    %c1_99 = arith.constant 1 : index
    %104 = vector.load %arg5[%c0_97, %c1_98, %c1_99] : memref<1x22x22xf32, #tpu.memory_space<vmem>>, vector<1x16x16xf32>
    %105 = vector.broadcast %103 : f32 to vector<1x16x16xf32>
    %106 = arith.mulf %105, %104 : vector<1x16x16xf32>
    %c1_100 = arith.constant 1 : index
    %c8_101 = arith.constant 8 : index
    %107 = memref.load %arg1[%c1_100, %c8_101] : memref<2x49xf32, #tpu.memory_space<smem>>
    %c0_102 = arith.constant 0 : index
    %c1_103 = arith.constant 1 : index
    %c1_104 = arith.constant 1 : index
    %108 = vector.load %arg6[%c0_102, %c1_103, %c1_104] : memref<1x22x22xf32, #tpu.memory_space<vmem>>, vector<1x16x16xf32>
    %109 = vector.broadcast %107 : f32 to vector<1x16x16xf32>
    %110 = arith.mulf %109, %108 : vector<1x16x16xf32>
    %111 = arith.addf %106, %110 : vector<1x16x16xf32>
    %112 = arith.addf %102, %111 : vector<1x16x16xf32>
    %c0_105 = arith.constant 0 : index
    %c9 = arith.constant 9 : index
    %113 = memref.load %arg1[%c0_105, %c9] : memref<2x49xf32, #tpu.memory_space<smem>>
    %c0_106 = arith.constant 0 : index
    %c1_107 = arith.constant 1 : index
    %c2_108 = arith.constant 2 : index
    %114 = vector.load %arg5[%c0_106, %c1_107, %c2_108] : memref<1x22x22xf32, #tpu.memory_space<vmem>>, vector<1x16x16xf32>
    %115 = vector.broadcast %113 : f32 to vector<1x16x16xf32>
    %116 = arith.mulf %115, %114 : vector<1x16x16xf32>
    %c1_109 = arith.constant 1 : index
    %c9_110 = arith.constant 9 : index
    %117 = memref.load %arg1[%c1_109, %c9_110] : memref<2x49xf32, #tpu.memory_space<smem>>
    %c0_111 = arith.constant 0 : index
    %c1_112 = arith.constant 1 : index
    %c2_113 = arith.constant 2 : index
    %118 = vector.load %arg6[%c0_111, %c1_112, %c2_113] : memref<1x22x22xf32, #tpu.memory_space<vmem>>, vector<1x16x16xf32>
    %119 = vector.broadcast %117 : f32 to vector<1x16x16xf32>
    %120 = arith.mulf %119, %118 : vector<1x16x16xf32>
    %121 = arith.addf %116, %120 : vector<1x16x16xf32>
    %122 = arith.addf %112, %121 : vector<1x16x16xf32>
    %c0_114 = arith.constant 0 : index
    %c10 = arith.constant 10 : index
    %123 = memref.load %arg1[%c0_114, %c10] : memref<2x49xf32, #tpu.memory_space<smem>>
    %c0_115 = arith.constant 0 : index
    %c1_116 = arith.constant 1 : index
    %c3_117 = arith.constant 3 : index
    %124 = vector.load %arg5[%c0_115, %c1_116, %c3_117] : memref<1x22x22xf32, #tpu.memory_space<vmem>>, vector<1x16x16xf32>
    %125 = vector.broadcast %123 : f32 to vector<1x16x16xf32>
    %126 = arith.mulf %125, %124 : vector<1x16x16xf32>
    %c1_118 = arith.constant 1 : index
    %c10_119 = arith.constant 10 : index
    %127 = memref.load %arg1[%c1_118, %c10_119] : memref<2x49xf32, #tpu.memory_space<smem>>
    %c0_120 = arith.constant 0 : index
    %c1_121 = arith.constant 1 : index
    %c3_122 = arith.constant 3 : index
    %128 = vector.load %arg6[%c0_120, %c1_121, %c3_122] : memref<1x22x22xf32, #tpu.memory_space<vmem>>, vector<1x16x16xf32>
    %129 = vector.broadcast %127 : f32 to vector<1x16x16xf32>
    %130 = arith.mulf %129, %128 : vector<1x16x16xf32>
    %131 = arith.addf %126, %130 : vector<1x16x16xf32>
    %132 = arith.addf %122, %131 : vector<1x16x16xf32>
    %c0_123 = arith.constant 0 : index
    %c11 = arith.constant 11 : index
    %133 = memref.load %arg1[%c0_123, %c11] : memref<2x49xf32, #tpu.memory_space<smem>>
    %c0_124 = arith.constant 0 : index
    %c1_125 = arith.constant 1 : index
    %c4_126 = arith.constant 4 : index
    %134 = vector.load %arg5[%c0_124, %c1_125, %c4_126] : memref<1x22x22xf32, #tpu.memory_space<vmem>>, vector<1x16x16xf32>
    %135 = vector.broadcast %133 : f32 to vector<1x16x16xf32>
    %136 = arith.mulf %135, %134 : vector<1x16x16xf32>
    %c1_127 = arith.constant 1 : index
    %c11_128 = arith.constant 11 : index
    %137 = memref.load %arg1[%c1_127, %c11_128] : memref<2x49xf32, #tpu.memory_space<smem>>
    %c0_129 = arith.constant 0 : index
    %c1_130 = arith.constant 1 : index
    %c4_131 = arith.constant 4 : index
    %138 = vector.load %arg6[%c0_129, %c1_130, %c4_131] : memref<1x22x22xf32, #tpu.memory_space<vmem>>, vector<1x16x16xf32>
    %139 = vector.broadcast %137 : f32 to vector<1x16x16xf32>
    %140 = arith.mulf %139, %138 : vector<1x16x16xf32>
    %141 = arith.addf %136, %140 : vector<1x16x16xf32>
    %142 = arith.addf %132, %141 : vector<1x16x16xf32>
    %c0_132 = arith.constant 0 : index
    %c12 = arith.constant 12 : index
    %143 = memref.load %arg1[%c0_132, %c12] : memref<2x49xf32, #tpu.memory_space<smem>>
    %c0_133 = arith.constant 0 : index
    %c1_134 = arith.constant 1 : index
    %c5_135 = arith.constant 5 : index
    %144 = vector.load %arg5[%c0_133, %c1_134, %c5_135] : memref<1x22x22xf32, #tpu.memory_space<vmem>>, vector<1x16x16xf32>
    %145 = vector.broadcast %143 : f32 to vector<1x16x16xf32>
    %146 = arith.mulf %145, %144 : vector<1x16x16xf32>
    %c1_136 = arith.constant 1 : index
    %c12_137 = arith.constant 12 : index
    %147 = memref.load %arg1[%c1_136, %c12_137] : memref<2x49xf32, #tpu.memory_space<smem>>
    %c0_138 = arith.constant 0 : index
    %c1_139 = arith.constant 1 : index
    %c5_140 = arith.constant 5 : index
    %148 = vector.load %arg6[%c0_138, %c1_139, %c5_140] : memref<1x22x22xf32, #tpu.memory_space<vmem>>, vector<1x16x16xf32>
    %149 = vector.broadcast %147 : f32 to vector<1x16x16xf32>
    %150 = arith.mulf %149, %148 : vector<1x16x16xf32>
    %151 = arith.addf %146, %150 : vector<1x16x16xf32>
    %152 = arith.addf %142, %151 : vector<1x16x16xf32>
    %c0_141 = arith.constant 0 : index
    %c13 = arith.constant 13 : index
    %153 = memref.load %arg1[%c0_141, %c13] : memref<2x49xf32, #tpu.memory_space<smem>>
    %c0_142 = arith.constant 0 : index
    %c1_143 = arith.constant 1 : index
    %c6_144 = arith.constant 6 : index
    %154 = vector.load %arg5[%c0_142, %c1_143, %c6_144] : memref<1x22x22xf32, #tpu.memory_space<vmem>>, vector<1x16x16xf32>
    %155 = vector.broadcast %153 : f32 to vector<1x16x16xf32>
    %156 = arith.mulf %155, %154 : vector<1x16x16xf32>
    %c1_145 = arith.constant 1 : index
    %c13_146 = arith.constant 13 : index
    %157 = memref.load %arg1[%c1_145, %c13_146] : memref<2x49xf32, #tpu.memory_space<smem>>
    %c0_147 = arith.constant 0 : index
    %c1_148 = arith.constant 1 : index
    %c6_149 = arith.constant 6 : index
    %158 = vector.load %arg6[%c0_147, %c1_148, %c6_149] : memref<1x22x22xf32, #tpu.memory_space<vmem>>, vector<1x16x16xf32>
    %159 = vector.broadcast %157 : f32 to vector<1x16x16xf32>
    %160 = arith.mulf %159, %158 : vector<1x16x16xf32>
    %161 = arith.addf %156, %160 : vector<1x16x16xf32>
    %162 = arith.addf %152, %161 : vector<1x16x16xf32>
    %c0_150 = arith.constant 0 : index
    %c14 = arith.constant 14 : index
    %163 = memref.load %arg1[%c0_150, %c14] : memref<2x49xf32, #tpu.memory_space<smem>>
    %c0_151 = arith.constant 0 : index
    %c2_152 = arith.constant 2 : index
    %c0_153 = arith.constant 0 : index
    %164 = vector.load %arg5[%c0_151, %c2_152, %c0_153] : memref<1x22x22xf32, #tpu.memory_space<vmem>>, vector<1x16x16xf32>
    %165 = vector.broadcast %163 : f32 to vector<1x16x16xf32>
    %166 = arith.mulf %165, %164 : vector<1x16x16xf32>
    %c1_154 = arith.constant 1 : index
    %c14_155 = arith.constant 14 : index
    %167 = memref.load %arg1[%c1_154, %c14_155] : memref<2x49xf32, #tpu.memory_space<smem>>
    %c0_156 = arith.constant 0 : index
    %c2_157 = arith.constant 2 : index
    %c0_158 = arith.constant 0 : index
    %168 = vector.load %arg6[%c0_156, %c2_157, %c0_158] : memref<1x22x22xf32, #tpu.memory_space<vmem>>, vector<1x16x16xf32>
    %169 = vector.broadcast %167 : f32 to vector<1x16x16xf32>
    %170 = arith.mulf %169, %168 : vector<1x16x16xf32>
    %171 = arith.addf %166, %170 : vector<1x16x16xf32>
    %172 = arith.addf %162, %171 : vector<1x16x16xf32>
    %c0_159 = arith.constant 0 : index
    %c15 = arith.constant 15 : index
    %173 = memref.load %arg1[%c0_159, %c15] : memref<2x49xf32, #tpu.memory_space<smem>>
    %c0_160 = arith.constant 0 : index
    %c2_161 = arith.constant 2 : index
    %c1_162 = arith.constant 1 : index
    %174 = vector.load %arg5[%c0_160, %c2_161, %c1_162] : memref<1x22x22xf32, #tpu.memory_space<vmem>>, vector<1x16x16xf32>
    %175 = vector.broadcast %173 : f32 to vector<1x16x16xf32>
    %176 = arith.mulf %175, %174 : vector<1x16x16xf32>
    %c1_163 = arith.constant 1 : index
    %c15_164 = arith.constant 15 : index
    %177 = memref.load %arg1[%c1_163, %c15_164] : memref<2x49xf32, #tpu.memory_space<smem>>
    %c0_165 = arith.constant 0 : index
    %c2_166 = arith.constant 2 : index
    %c1_167 = arith.constant 1 : index
    %178 = vector.load %arg6[%c0_165, %c2_166, %c1_167] : memref<1x22x22xf32, #tpu.memory_space<vmem>>, vector<1x16x16xf32>
    %179 = vector.broadcast %177 : f32 to vector<1x16x16xf32>
    %180 = arith.mulf %179, %178 : vector<1x16x16xf32>
    %181 = arith.addf %176, %180 : vector<1x16x16xf32>
    %182 = arith.addf %172, %181 : vector<1x16x16xf32>
    %c0_168 = arith.constant 0 : index
    %c16 = arith.constant 16 : index
    %183 = memref.load %arg1[%c0_168, %c16] : memref<2x49xf32, #tpu.memory_space<smem>>
    %c0_169 = arith.constant 0 : index
    %c2_170 = arith.constant 2 : index
    %c2_171 = arith.constant 2 : index
    %184 = vector.load %arg5[%c0_169, %c2_170, %c2_171] : memref<1x22x22xf32, #tpu.memory_space<vmem>>, vector<1x16x16xf32>
    %185 = vector.broadcast %183 : f32 to vector<1x16x16xf32>
    %186 = arith.mulf %185, %184 : vector<1x16x16xf32>
    %c1_172 = arith.constant 1 : index
    %c16_173 = arith.constant 16 : index
    %187 = memref.load %arg1[%c1_172, %c16_173] : memref<2x49xf32, #tpu.memory_space<smem>>
    %c0_174 = arith.constant 0 : index
    %c2_175 = arith.constant 2 : index
    %c2_176 = arith.constant 2 : index
    %188 = vector.load %arg6[%c0_174, %c2_175, %c2_176] : memref<1x22x22xf32, #tpu.memory_space<vmem>>, vector<1x16x16xf32>
    %189 = vector.broadcast %187 : f32 to vector<1x16x16xf32>
    %190 = arith.mulf %189, %188 : vector<1x16x16xf32>
    %191 = arith.addf %186, %190 : vector<1x16x16xf32>
    %192 = arith.addf %182, %191 : vector<1x16x16xf32>
    %c0_177 = arith.constant 0 : index
    %c17 = arith.constant 17 : index
    %193 = memref.load %arg1[%c0_177, %c17] : memref<2x49xf32, #tpu.memory_space<smem>>
    %c0_178 = arith.constant 0 : index
    %c2_179 = arith.constant 2 : index
    %c3_180 = arith.constant 3 : index
    %194 = vector.load %arg5[%c0_178, %c2_179, %c3_180] : memref<1x22x22xf32, #tpu.memory_space<vmem>>, vector<1x16x16xf32>
    %195 = vector.broadcast %193 : f32 to vector<1x16x16xf32>
    %196 = arith.mulf %195, %194 : vector<1x16x16xf32>
    %c1_181 = arith.constant 1 : index
    %c17_182 = arith.constant 17 : index
    %197 = memref.load %arg1[%c1_181, %c17_182] : memref<2x49xf32, #tpu.memory_space<smem>>
    %c0_183 = arith.constant 0 : index
    %c2_184 = arith.constant 2 : index
    %c3_185 = arith.constant 3 : index
    %198 = vector.load %arg6[%c0_183, %c2_184, %c3_185] : memref<1x22x22xf32, #tpu.memory_space<vmem>>, vector<1x16x16xf32>
    %199 = vector.broadcast %197 : f32 to vector<1x16x16xf32>
    %200 = arith.mulf %199, %198 : vector<1x16x16xf32>
    %201 = arith.addf %196, %200 : vector<1x16x16xf32>
    %202 = arith.addf %192, %201 : vector<1x16x16xf32>
    %c0_186 = arith.constant 0 : index
    %c18 = arith.constant 18 : index
    %203 = memref.load %arg1[%c0_186, %c18] : memref<2x49xf32, #tpu.memory_space<smem>>
    %c0_187 = arith.constant 0 : index
    %c2_188 = arith.constant 2 : index
    %c4_189 = arith.constant 4 : index
    %204 = vector.load %arg5[%c0_187, %c2_188, %c4_189] : memref<1x22x22xf32, #tpu.memory_space<vmem>>, vector<1x16x16xf32>
    %205 = vector.broadcast %203 : f32 to vector<1x16x16xf32>
    %206 = arith.mulf %205, %204 : vector<1x16x16xf32>
    %c1_190 = arith.constant 1 : index
    %c18_191 = arith.constant 18 : index
    %207 = memref.load %arg1[%c1_190, %c18_191] : memref<2x49xf32, #tpu.memory_space<smem>>
    %c0_192 = arith.constant 0 : index
    %c2_193 = arith.constant 2 : index
    %c4_194 = arith.constant 4 : index
    %208 = vector.load %arg6[%c0_192, %c2_193, %c4_194] : memref<1x22x22xf32, #tpu.memory_space<vmem>>, vector<1x16x16xf32>
    %209 = vector.broadcast %207 : f32 to vector<1x16x16xf32>
    %210 = arith.mulf %209, %208 : vector<1x16x16xf32>
    %211 = arith.addf %206, %210 : vector<1x16x16xf32>
    %212 = arith.addf %202, %211 : vector<1x16x16xf32>
    %c0_195 = arith.constant 0 : index
    %c19 = arith.constant 19 : index
    %213 = memref.load %arg1[%c0_195, %c19] : memref<2x49xf32, #tpu.memory_space<smem>>
    %c0_196 = arith.constant 0 : index
    %c2_197 = arith.constant 2 : index
    %c5_198 = arith.constant 5 : index
    %214 = vector.load %arg5[%c0_196, %c2_197, %c5_198] : memref<1x22x22xf32, #tpu.memory_space<vmem>>, vector<1x16x16xf32>
    %215 = vector.broadcast %213 : f32 to vector<1x16x16xf32>
    %216 = arith.mulf %215, %214 : vector<1x16x16xf32>
    %c1_199 = arith.constant 1 : index
    %c19_200 = arith.constant 19 : index
    %217 = memref.load %arg1[%c1_199, %c19_200] : memref<2x49xf32, #tpu.memory_space<smem>>
    %c0_201 = arith.constant 0 : index
    %c2_202 = arith.constant 2 : index
    %c5_203 = arith.constant 5 : index
    %218 = vector.load %arg6[%c0_201, %c2_202, %c5_203] : memref<1x22x22xf32, #tpu.memory_space<vmem>>, vector<1x16x16xf32>
    %219 = vector.broadcast %217 : f32 to vector<1x16x16xf32>
    %220 = arith.mulf %219, %218 : vector<1x16x16xf32>
    %221 = arith.addf %216, %220 : vector<1x16x16xf32>
    %222 = arith.addf %212, %221 : vector<1x16x16xf32>
    %c0_204 = arith.constant 0 : index
    %c20 = arith.constant 20 : index
    %223 = memref.load %arg1[%c0_204, %c20] : memref<2x49xf32, #tpu.memory_space<smem>>
    %c0_205 = arith.constant 0 : index
    %c2_206 = arith.constant 2 : index
    %c6_207 = arith.constant 6 : index
    %224 = vector.load %arg5[%c0_205, %c2_206, %c6_207] : memref<1x22x22xf32, #tpu.memory_space<vmem>>, vector<1x16x16xf32>
    %225 = vector.broadcast %223 : f32 to vector<1x16x16xf32>
    %226 = arith.mulf %225, %224 : vector<1x16x16xf32>
    %c1_208 = arith.constant 1 : index
    %c20_209 = arith.constant 20 : index
    %227 = memref.load %arg1[%c1_208, %c20_209] : memref<2x49xf32, #tpu.memory_space<smem>>
    %c0_210 = arith.constant 0 : index
    %c2_211 = arith.constant 2 : index
    %c6_212 = arith.constant 6 : index
    %228 = vector.load %arg6[%c0_210, %c2_211, %c6_212] : memref<1x22x22xf32, #tpu.memory_space<vmem>>, vector<1x16x16xf32>
    %229 = vector.broadcast %227 : f32 to vector<1x16x16xf32>
    %230 = arith.mulf %229, %228 : vector<1x16x16xf32>
    %231 = arith.addf %226, %230 : vector<1x16x16xf32>
    %232 = arith.addf %222, %231 : vector<1x16x16xf32>
    %c0_213 = arith.constant 0 : index
    %c21 = arith.constant 21 : index
    %233 = memref.load %arg1[%c0_213, %c21] : memref<2x49xf32, #tpu.memory_space<smem>>
    %c0_214 = arith.constant 0 : index
    %c3_215 = arith.constant 3 : index
    %c0_216 = arith.constant 0 : index
    %234 = vector.load %arg5[%c0_214, %c3_215, %c0_216] : memref<1x22x22xf32, #tpu.memory_space<vmem>>, vector<1x16x16xf32>
    %235 = vector.broadcast %233 : f32 to vector<1x16x16xf32>
    %236 = arith.mulf %235, %234 : vector<1x16x16xf32>
    %c1_217 = arith.constant 1 : index
    %c21_218 = arith.constant 21 : index
    %237 = memref.load %arg1[%c1_217, %c21_218] : memref<2x49xf32, #tpu.memory_space<smem>>
    %c0_219 = arith.constant 0 : index
    %c3_220 = arith.constant 3 : index
    %c0_221 = arith.constant 0 : index
    %238 = vector.load %arg6[%c0_219, %c3_220, %c0_221] : memref<1x22x22xf32, #tpu.memory_space<vmem>>, vector<1x16x16xf32>
    %239 = vector.broadcast %237 : f32 to vector<1x16x16xf32>
    %240 = arith.mulf %239, %238 : vector<1x16x16xf32>
    %241 = arith.addf %236, %240 : vector<1x16x16xf32>
    %242 = arith.addf %232, %241 : vector<1x16x16xf32>
    %c0_222 = arith.constant 0 : index
    %c22 = arith.constant 22 : index
    %243 = memref.load %arg1[%c0_222, %c22] : memref<2x49xf32, #tpu.memory_space<smem>>
    %c0_223 = arith.constant 0 : index
    %c3_224 = arith.constant 3 : index
    %c1_225 = arith.constant 1 : index
    %244 = vector.load %arg5[%c0_223, %c3_224, %c1_225] : memref<1x22x22xf32, #tpu.memory_space<vmem>>, vector<1x16x16xf32>
    %245 = vector.broadcast %243 : f32 to vector<1x16x16xf32>
    %246 = arith.mulf %245, %244 : vector<1x16x16xf32>
    %c1_226 = arith.constant 1 : index
    %c22_227 = arith.constant 22 : index
    %247 = memref.load %arg1[%c1_226, %c22_227] : memref<2x49xf32, #tpu.memory_space<smem>>
    %c0_228 = arith.constant 0 : index
    %c3_229 = arith.constant 3 : index
    %c1_230 = arith.constant 1 : index
    %248 = vector.load %arg6[%c0_228, %c3_229, %c1_230] : memref<1x22x22xf32, #tpu.memory_space<vmem>>, vector<1x16x16xf32>
    %249 = vector.broadcast %247 : f32 to vector<1x16x16xf32>
    %250 = arith.mulf %249, %248 : vector<1x16x16xf32>
    %251 = arith.addf %246, %250 : vector<1x16x16xf32>
    %252 = arith.addf %242, %251 : vector<1x16x16xf32>
    %c0_231 = arith.constant 0 : index
    %c23 = arith.constant 23 : index
    %253 = memref.load %arg1[%c0_231, %c23] : memref<2x49xf32, #tpu.memory_space<smem>>
    %c0_232 = arith.constant 0 : index
    %c3_233 = arith.constant 3 : index
    %c2_234 = arith.constant 2 : index
    %254 = vector.load %arg5[%c0_232, %c3_233, %c2_234] : memref<1x22x22xf32, #tpu.memory_space<vmem>>, vector<1x16x16xf32>
    %255 = vector.broadcast %253 : f32 to vector<1x16x16xf32>
    %256 = arith.mulf %255, %254 : vector<1x16x16xf32>
    %c1_235 = arith.constant 1 : index
    %c23_236 = arith.constant 23 : index
    %257 = memref.load %arg1[%c1_235, %c23_236] : memref<2x49xf32, #tpu.memory_space<smem>>
    %c0_237 = arith.constant 0 : index
    %c3_238 = arith.constant 3 : index
    %c2_239 = arith.constant 2 : index
    %258 = vector.load %arg6[%c0_237, %c3_238, %c2_239] : memref<1x22x22xf32, #tpu.memory_space<vmem>>, vector<1x16x16xf32>
    %259 = vector.broadcast %257 : f32 to vector<1x16x16xf32>
    %260 = arith.mulf %259, %258 : vector<1x16x16xf32>
    %261 = arith.addf %256, %260 : vector<1x16x16xf32>
    %262 = arith.addf %252, %261 : vector<1x16x16xf32>
    %c0_240 = arith.constant 0 : index
    %c24 = arith.constant 24 : index
    %263 = memref.load %arg1[%c0_240, %c24] : memref<2x49xf32, #tpu.memory_space<smem>>
    %c0_241 = arith.constant 0 : index
    %c3_242 = arith.constant 3 : index
    %c3_243 = arith.constant 3 : index
    %264 = vector.load %arg5[%c0_241, %c3_242, %c3_243] : memref<1x22x22xf32, #tpu.memory_space<vmem>>, vector<1x16x16xf32>
    %265 = vector.broadcast %263 : f32 to vector<1x16x16xf32>
    %266 = arith.mulf %265, %264 : vector<1x16x16xf32>
    %c1_244 = arith.constant 1 : index
    %c24_245 = arith.constant 24 : index
    %267 = memref.load %arg1[%c1_244, %c24_245] : memref<2x49xf32, #tpu.memory_space<smem>>
    %c0_246 = arith.constant 0 : index
    %c3_247 = arith.constant 3 : index
    %c3_248 = arith.constant 3 : index
    %268 = vector.load %arg6[%c0_246, %c3_247, %c3_248] : memref<1x22x22xf32, #tpu.memory_space<vmem>>, vector<1x16x16xf32>
    %269 = vector.broadcast %267 : f32 to vector<1x16x16xf32>
    %270 = arith.mulf %269, %268 : vector<1x16x16xf32>
    %271 = arith.addf %266, %270 : vector<1x16x16xf32>
    %272 = arith.addf %262, %271 : vector<1x16x16xf32>
    %c0_249 = arith.constant 0 : index
    %c25 = arith.constant 25 : index
    %273 = memref.load %arg1[%c0_249, %c25] : memref<2x49xf32, #tpu.memory_space<smem>>
    %c0_250 = arith.constant 0 : index
    %c3_251 = arith.constant 3 : index
    %c4_252 = arith.constant 4 : index
    %274 = vector.load %arg5[%c0_250, %c3_251, %c4_252] : memref<1x22x22xf32, #tpu.memory_space<vmem>>, vector<1x16x16xf32>
    %275 = vector.broadcast %273 : f32 to vector<1x16x16xf32>
    %276 = arith.mulf %275, %274 : vector<1x16x16xf32>
    %c1_253 = arith.constant 1 : index
    %c25_254 = arith.constant 25 : index
    %277 = memref.load %arg1[%c1_253, %c25_254] : memref<2x49xf32, #tpu.memory_space<smem>>
    %c0_255 = arith.constant 0 : index
    %c3_256 = arith.constant 3 : index
    %c4_257 = arith.constant 4 : index
    %278 = vector.load %arg6[%c0_255, %c3_256, %c4_257] : memref<1x22x22xf32, #tpu.memory_space<vmem>>, vector<1x16x16xf32>
    %279 = vector.broadcast %277 : f32 to vector<1x16x16xf32>
    %280 = arith.mulf %279, %278 : vector<1x16x16xf32>
    %281 = arith.addf %276, %280 : vector<1x16x16xf32>
    %282 = arith.addf %272, %281 : vector<1x16x16xf32>
    %c0_258 = arith.constant 0 : index
    %c26 = arith.constant 26 : index
    %283 = memref.load %arg1[%c0_258, %c26] : memref<2x49xf32, #tpu.memory_space<smem>>
    %c0_259 = arith.constant 0 : index
    %c3_260 = arith.constant 3 : index
    %c5_261 = arith.constant 5 : index
    %284 = vector.load %arg5[%c0_259, %c3_260, %c5_261] : memref<1x22x22xf32, #tpu.memory_space<vmem>>, vector<1x16x16xf32>
    %285 = vector.broadcast %283 : f32 to vector<1x16x16xf32>
    %286 = arith.mulf %285, %284 : vector<1x16x16xf32>
    %c1_262 = arith.constant 1 : index
    %c26_263 = arith.constant 26 : index
    %287 = memref.load %arg1[%c1_262, %c26_263] : memref<2x49xf32, #tpu.memory_space<smem>>
    %c0_264 = arith.constant 0 : index
    %c3_265 = arith.constant 3 : index
    %c5_266 = arith.constant 5 : index
    %288 = vector.load %arg6[%c0_264, %c3_265, %c5_266] : memref<1x22x22xf32, #tpu.memory_space<vmem>>, vector<1x16x16xf32>
    %289 = vector.broadcast %287 : f32 to vector<1x16x16xf32>
    %290 = arith.mulf %289, %288 : vector<1x16x16xf32>
    %291 = arith.addf %286, %290 : vector<1x16x16xf32>
    %292 = arith.addf %282, %291 : vector<1x16x16xf32>
    %c0_267 = arith.constant 0 : index
    %c27 = arith.constant 27 : index
    %293 = memref.load %arg1[%c0_267, %c27] : memref<2x49xf32, #tpu.memory_space<smem>>
    %c0_268 = arith.constant 0 : index
    %c3_269 = arith.constant 3 : index
    %c6_270 = arith.constant 6 : index
    %294 = vector.load %arg5[%c0_268, %c3_269, %c6_270] : memref<1x22x22xf32, #tpu.memory_space<vmem>>, vector<1x16x16xf32>
    %295 = vector.broadcast %293 : f32 to vector<1x16x16xf32>
    %296 = arith.mulf %295, %294 : vector<1x16x16xf32>
    %c1_271 = arith.constant 1 : index
    %c27_272 = arith.constant 27 : index
    %297 = memref.load %arg1[%c1_271, %c27_272] : memref<2x49xf32, #tpu.memory_space<smem>>
    %c0_273 = arith.constant 0 : index
    %c3_274 = arith.constant 3 : index
    %c6_275 = arith.constant 6 : index
    %298 = vector.load %arg6[%c0_273, %c3_274, %c6_275] : memref<1x22x22xf32, #tpu.memory_space<vmem>>, vector<1x16x16xf32>
    %299 = vector.broadcast %297 : f32 to vector<1x16x16xf32>
    %300 = arith.mulf %299, %298 : vector<1x16x16xf32>
    %301 = arith.addf %296, %300 : vector<1x16x16xf32>
    %302 = arith.addf %292, %301 : vector<1x16x16xf32>
    %c0_276 = arith.constant 0 : index
    %c28 = arith.constant 28 : index
    %303 = memref.load %arg1[%c0_276, %c28] : memref<2x49xf32, #tpu.memory_space<smem>>
    %c0_277 = arith.constant 0 : index
    %c4_278 = arith.constant 4 : index
    %c0_279 = arith.constant 0 : index
    %304 = vector.load %arg5[%c0_277, %c4_278, %c0_279] : memref<1x22x22xf32, #tpu.memory_space<vmem>>, vector<1x16x16xf32>
    %305 = vector.broadcast %303 : f32 to vector<1x16x16xf32>
    %306 = arith.mulf %305, %304 : vector<1x16x16xf32>
    %c1_280 = arith.constant 1 : index
    %c28_281 = arith.constant 28 : index
    %307 = memref.load %arg1[%c1_280, %c28_281] : memref<2x49xf32, #tpu.memory_space<smem>>
    %c0_282 = arith.constant 0 : index
    %c4_283 = arith.constant 4 : index
    %c0_284 = arith.constant 0 : index
    %308 = vector.load %arg6[%c0_282, %c4_283, %c0_284] : memref<1x22x22xf32, #tpu.memory_space<vmem>>, vector<1x16x16xf32>
    %309 = vector.broadcast %307 : f32 to vector<1x16x16xf32>
    %310 = arith.mulf %309, %308 : vector<1x16x16xf32>
    %311 = arith.addf %306, %310 : vector<1x16x16xf32>
    %312 = arith.addf %302, %311 : vector<1x16x16xf32>
    %c0_285 = arith.constant 0 : index
    %c29 = arith.constant 29 : index
    %313 = memref.load %arg1[%c0_285, %c29] : memref<2x49xf32, #tpu.memory_space<smem>>
    %c0_286 = arith.constant 0 : index
    %c4_287 = arith.constant 4 : index
    %c1_288 = arith.constant 1 : index
    %314 = vector.load %arg5[%c0_286, %c4_287, %c1_288] : memref<1x22x22xf32, #tpu.memory_space<vmem>>, vector<1x16x16xf32>
    %315 = vector.broadcast %313 : f32 to vector<1x16x16xf32>
    %316 = arith.mulf %315, %314 : vector<1x16x16xf32>
    %c1_289 = arith.constant 1 : index
    %c29_290 = arith.constant 29 : index
    %317 = memref.load %arg1[%c1_289, %c29_290] : memref<2x49xf32, #tpu.memory_space<smem>>
    %c0_291 = arith.constant 0 : index
    %c4_292 = arith.constant 4 : index
    %c1_293 = arith.constant 1 : index
    %318 = vector.load %arg6[%c0_291, %c4_292, %c1_293] : memref<1x22x22xf32, #tpu.memory_space<vmem>>, vector<1x16x16xf32>
    %319 = vector.broadcast %317 : f32 to vector<1x16x16xf32>
    %320 = arith.mulf %319, %318 : vector<1x16x16xf32>
    %321 = arith.addf %316, %320 : vector<1x16x16xf32>
    %322 = arith.addf %312, %321 : vector<1x16x16xf32>
    %c0_294 = arith.constant 0 : index
    %c30 = arith.constant 30 : index
    %323 = memref.load %arg1[%c0_294, %c30] : memref<2x49xf32, #tpu.memory_space<smem>>
    %c0_295 = arith.constant 0 : index
    %c4_296 = arith.constant 4 : index
    %c2_297 = arith.constant 2 : index
    %324 = vector.load %arg5[%c0_295, %c4_296, %c2_297] : memref<1x22x22xf32, #tpu.memory_space<vmem>>, vector<1x16x16xf32>
    %325 = vector.broadcast %323 : f32 to vector<1x16x16xf32>
    %326 = arith.mulf %325, %324 : vector<1x16x16xf32>
    %c1_298 = arith.constant 1 : index
    %c30_299 = arith.constant 30 : index
    %327 = memref.load %arg1[%c1_298, %c30_299] : memref<2x49xf32, #tpu.memory_space<smem>>
    %c0_300 = arith.constant 0 : index
    %c4_301 = arith.constant 4 : index
    %c2_302 = arith.constant 2 : index
    %328 = vector.load %arg6[%c0_300, %c4_301, %c2_302] : memref<1x22x22xf32, #tpu.memory_space<vmem>>, vector<1x16x16xf32>
    %329 = vector.broadcast %327 : f32 to vector<1x16x16xf32>
    %330 = arith.mulf %329, %328 : vector<1x16x16xf32>
    %331 = arith.addf %326, %330 : vector<1x16x16xf32>
    %332 = arith.addf %322, %331 : vector<1x16x16xf32>
    %c0_303 = arith.constant 0 : index
    %c31 = arith.constant 31 : index
    %333 = memref.load %arg1[%c0_303, %c31] : memref<2x49xf32, #tpu.memory_space<smem>>
    %c0_304 = arith.constant 0 : index
    %c4_305 = arith.constant 4 : index
    %c3_306 = arith.constant 3 : index
    %334 = vector.load %arg5[%c0_304, %c4_305, %c3_306] : memref<1x22x22xf32, #tpu.memory_space<vmem>>, vector<1x16x16xf32>
    %335 = vector.broadcast %333 : f32 to vector<1x16x16xf32>
    %336 = arith.mulf %335, %334 : vector<1x16x16xf32>
    %c1_307 = arith.constant 1 : index
    %c31_308 = arith.constant 31 : index
    %337 = memref.load %arg1[%c1_307, %c31_308] : memref<2x49xf32, #tpu.memory_space<smem>>
    %c0_309 = arith.constant 0 : index
    %c4_310 = arith.constant 4 : index
    %c3_311 = arith.constant 3 : index
    %338 = vector.load %arg6[%c0_309, %c4_310, %c3_311] : memref<1x22x22xf32, #tpu.memory_space<vmem>>, vector<1x16x16xf32>
    %339 = vector.broadcast %337 : f32 to vector<1x16x16xf32>
    %340 = arith.mulf %339, %338 : vector<1x16x16xf32>
    %341 = arith.addf %336, %340 : vector<1x16x16xf32>
    %342 = arith.addf %332, %341 : vector<1x16x16xf32>
    %c0_312 = arith.constant 0 : index
    %c32 = arith.constant 32 : index
    %343 = memref.load %arg1[%c0_312, %c32] : memref<2x49xf32, #tpu.memory_space<smem>>
    %c0_313 = arith.constant 0 : index
    %c4_314 = arith.constant 4 : index
    %c4_315 = arith.constant 4 : index
    %344 = vector.load %arg5[%c0_313, %c4_314, %c4_315] : memref<1x22x22xf32, #tpu.memory_space<vmem>>, vector<1x16x16xf32>
    %345 = vector.broadcast %343 : f32 to vector<1x16x16xf32>
    %346 = arith.mulf %345, %344 : vector<1x16x16xf32>
    %c1_316 = arith.constant 1 : index
    %c32_317 = arith.constant 32 : index
    %347 = memref.load %arg1[%c1_316, %c32_317] : memref<2x49xf32, #tpu.memory_space<smem>>
    %c0_318 = arith.constant 0 : index
    %c4_319 = arith.constant 4 : index
    %c4_320 = arith.constant 4 : index
    %348 = vector.load %arg6[%c0_318, %c4_319, %c4_320] : memref<1x22x22xf32, #tpu.memory_space<vmem>>, vector<1x16x16xf32>
    %349 = vector.broadcast %347 : f32 to vector<1x16x16xf32>
    %350 = arith.mulf %349, %348 : vector<1x16x16xf32>
    %351 = arith.addf %346, %350 : vector<1x16x16xf32>
    %352 = arith.addf %342, %351 : vector<1x16x16xf32>
    %c0_321 = arith.constant 0 : index
    %c33 = arith.constant 33 : index
    %353 = memref.load %arg1[%c0_321, %c33] : memref<2x49xf32, #tpu.memory_space<smem>>
    %c0_322 = arith.constant 0 : index
    %c4_323 = arith.constant 4 : index
    %c5_324 = arith.constant 5 : index
    %354 = vector.load %arg5[%c0_322, %c4_323, %c5_324] : memref<1x22x22xf32, #tpu.memory_space<vmem>>, vector<1x16x16xf32>
    %355 = vector.broadcast %353 : f32 to vector<1x16x16xf32>
    %356 = arith.mulf %355, %354 : vector<1x16x16xf32>
    %c1_325 = arith.constant 1 : index
    %c33_326 = arith.constant 33 : index
    %357 = memref.load %arg1[%c1_325, %c33_326] : memref<2x49xf32, #tpu.memory_space<smem>>
    %c0_327 = arith.constant 0 : index
    %c4_328 = arith.constant 4 : index
    %c5_329 = arith.constant 5 : index
    %358 = vector.load %arg6[%c0_327, %c4_328, %c5_329] : memref<1x22x22xf32, #tpu.memory_space<vmem>>, vector<1x16x16xf32>
    %359 = vector.broadcast %357 : f32 to vector<1x16x16xf32>
    %360 = arith.mulf %359, %358 : vector<1x16x16xf32>
    %361 = arith.addf %356, %360 : vector<1x16x16xf32>
    %362 = arith.addf %352, %361 : vector<1x16x16xf32>
    %c0_330 = arith.constant 0 : index
    %c34 = arith.constant 34 : index
    %363 = memref.load %arg1[%c0_330, %c34] : memref<2x49xf32, #tpu.memory_space<smem>>
    %c0_331 = arith.constant 0 : index
    %c4_332 = arith.constant 4 : index
    %c6_333 = arith.constant 6 : index
    %364 = vector.load %arg5[%c0_331, %c4_332, %c6_333] : memref<1x22x22xf32, #tpu.memory_space<vmem>>, vector<1x16x16xf32>
    %365 = vector.broadcast %363 : f32 to vector<1x16x16xf32>
    %366 = arith.mulf %365, %364 : vector<1x16x16xf32>
    %c1_334 = arith.constant 1 : index
    %c34_335 = arith.constant 34 : index
    %367 = memref.load %arg1[%c1_334, %c34_335] : memref<2x49xf32, #tpu.memory_space<smem>>
    %c0_336 = arith.constant 0 : index
    %c4_337 = arith.constant 4 : index
    %c6_338 = arith.constant 6 : index
    %368 = vector.load %arg6[%c0_336, %c4_337, %c6_338] : memref<1x22x22xf32, #tpu.memory_space<vmem>>, vector<1x16x16xf32>
    %369 = vector.broadcast %367 : f32 to vector<1x16x16xf32>
    %370 = arith.mulf %369, %368 : vector<1x16x16xf32>
    %371 = arith.addf %366, %370 : vector<1x16x16xf32>
    %372 = arith.addf %362, %371 : vector<1x16x16xf32>
    %c0_339 = arith.constant 0 : index
    %c35 = arith.constant 35 : index
    %373 = memref.load %arg1[%c0_339, %c35] : memref<2x49xf32, #tpu.memory_space<smem>>
    %c0_340 = arith.constant 0 : index
    %c5_341 = arith.constant 5 : index
    %c0_342 = arith.constant 0 : index
    %374 = vector.load %arg5[%c0_340, %c5_341, %c0_342] : memref<1x22x22xf32, #tpu.memory_space<vmem>>, vector<1x16x16xf32>
    %375 = vector.broadcast %373 : f32 to vector<1x16x16xf32>
    %376 = arith.mulf %375, %374 : vector<1x16x16xf32>
    %c1_343 = arith.constant 1 : index
    %c35_344 = arith.constant 35 : index
    %377 = memref.load %arg1[%c1_343, %c35_344] : memref<2x49xf32, #tpu.memory_space<smem>>
    %c0_345 = arith.constant 0 : index
    %c5_346 = arith.constant 5 : index
    %c0_347 = arith.constant 0 : index
    %378 = vector.load %arg6[%c0_345, %c5_346, %c0_347] : memref<1x22x22xf32, #tpu.memory_space<vmem>>, vector<1x16x16xf32>
    %379 = vector.broadcast %377 : f32 to vector<1x16x16xf32>
    %380 = arith.mulf %379, %378 : vector<1x16x16xf32>
    %381 = arith.addf %376, %380 : vector<1x16x16xf32>
    %382 = arith.addf %372, %381 : vector<1x16x16xf32>
    %c0_348 = arith.constant 0 : index
    %c36 = arith.constant 36 : index
    %383 = memref.load %arg1[%c0_348, %c36] : memref<2x49xf32, #tpu.memory_space<smem>>
    %c0_349 = arith.constant 0 : index
    %c5_350 = arith.constant 5 : index
    %c1_351 = arith.constant 1 : index
    %384 = vector.load %arg5[%c0_349, %c5_350, %c1_351] : memref<1x22x22xf32, #tpu.memory_space<vmem>>, vector<1x16x16xf32>
    %385 = vector.broadcast %383 : f32 to vector<1x16x16xf32>
    %386 = arith.mulf %385, %384 : vector<1x16x16xf32>
    %c1_352 = arith.constant 1 : index
    %c36_353 = arith.constant 36 : index
    %387 = memref.load %arg1[%c1_352, %c36_353] : memref<2x49xf32, #tpu.memory_space<smem>>
    %c0_354 = arith.constant 0 : index
    %c5_355 = arith.constant 5 : index
    %c1_356 = arith.constant 1 : index
    %388 = vector.load %arg6[%c0_354, %c5_355, %c1_356] : memref<1x22x22xf32, #tpu.memory_space<vmem>>, vector<1x16x16xf32>
    %389 = vector.broadcast %387 : f32 to vector<1x16x16xf32>
    %390 = arith.mulf %389, %388 : vector<1x16x16xf32>
    %391 = arith.addf %386, %390 : vector<1x16x16xf32>
    %392 = arith.addf %382, %391 : vector<1x16x16xf32>
    %c0_357 = arith.constant 0 : index
    %c37 = arith.constant 37 : index
    %393 = memref.load %arg1[%c0_357, %c37] : memref<2x49xf32, #tpu.memory_space<smem>>
    %c0_358 = arith.constant 0 : index
    %c5_359 = arith.constant 5 : index
    %c2_360 = arith.constant 2 : index
    %394 = vector.load %arg5[%c0_358, %c5_359, %c2_360] : memref<1x22x22xf32, #tpu.memory_space<vmem>>, vector<1x16x16xf32>
    %395 = vector.broadcast %393 : f32 to vector<1x16x16xf32>
    %396 = arith.mulf %395, %394 : vector<1x16x16xf32>
    %c1_361 = arith.constant 1 : index
    %c37_362 = arith.constant 37 : index
    %397 = memref.load %arg1[%c1_361, %c37_362] : memref<2x49xf32, #tpu.memory_space<smem>>
    %c0_363 = arith.constant 0 : index
    %c5_364 = arith.constant 5 : index
    %c2_365 = arith.constant 2 : index
    %398 = vector.load %arg6[%c0_363, %c5_364, %c2_365] : memref<1x22x22xf32, #tpu.memory_space<vmem>>, vector<1x16x16xf32>
    %399 = vector.broadcast %397 : f32 to vector<1x16x16xf32>
    %400 = arith.mulf %399, %398 : vector<1x16x16xf32>
    %401 = arith.addf %396, %400 : vector<1x16x16xf32>
    %402 = arith.addf %392, %401 : vector<1x16x16xf32>
    %c0_366 = arith.constant 0 : index
    %c38 = arith.constant 38 : index
    %403 = memref.load %arg1[%c0_366, %c38] : memref<2x49xf32, #tpu.memory_space<smem>>
    %c0_367 = arith.constant 0 : index
    %c5_368 = arith.constant 5 : index
    %c3_369 = arith.constant 3 : index
    %404 = vector.load %arg5[%c0_367, %c5_368, %c3_369] : memref<1x22x22xf32, #tpu.memory_space<vmem>>, vector<1x16x16xf32>
    %405 = vector.broadcast %403 : f32 to vector<1x16x16xf32>
    %406 = arith.mulf %405, %404 : vector<1x16x16xf32>
    %c1_370 = arith.constant 1 : index
    %c38_371 = arith.constant 38 : index
    %407 = memref.load %arg1[%c1_370, %c38_371] : memref<2x49xf32, #tpu.memory_space<smem>>
    %c0_372 = arith.constant 0 : index
    %c5_373 = arith.constant 5 : index
    %c3_374 = arith.constant 3 : index
    %408 = vector.load %arg6[%c0_372, %c5_373, %c3_374] : memref<1x22x22xf32, #tpu.memory_space<vmem>>, vector<1x16x16xf32>
    %409 = vector.broadcast %407 : f32 to vector<1x16x16xf32>
    %410 = arith.mulf %409, %408 : vector<1x16x16xf32>
    %411 = arith.addf %406, %410 : vector<1x16x16xf32>
    %412 = arith.addf %402, %411 : vector<1x16x16xf32>
    %c0_375 = arith.constant 0 : index
    %c39 = arith.constant 39 : index
    %413 = memref.load %arg1[%c0_375, %c39] : memref<2x49xf32, #tpu.memory_space<smem>>
    %c0_376 = arith.constant 0 : index
    %c5_377 = arith.constant 5 : index
    %c4_378 = arith.constant 4 : index
    %414 = vector.load %arg5[%c0_376, %c5_377, %c4_378] : memref<1x22x22xf32, #tpu.memory_space<vmem>>, vector<1x16x16xf32>
    %415 = vector.broadcast %413 : f32 to vector<1x16x16xf32>
    %416 = arith.mulf %415, %414 : vector<1x16x16xf32>
    %c1_379 = arith.constant 1 : index
    %c39_380 = arith.constant 39 : index
    %417 = memref.load %arg1[%c1_379, %c39_380] : memref<2x49xf32, #tpu.memory_space<smem>>
    %c0_381 = arith.constant 0 : index
    %c5_382 = arith.constant 5 : index
    %c4_383 = arith.constant 4 : index
    %418 = vector.load %arg6[%c0_381, %c5_382, %c4_383] : memref<1x22x22xf32, #tpu.memory_space<vmem>>, vector<1x16x16xf32>
    %419 = vector.broadcast %417 : f32 to vector<1x16x16xf32>
    %420 = arith.mulf %419, %418 : vector<1x16x16xf32>
    %421 = arith.addf %416, %420 : vector<1x16x16xf32>
    %422 = arith.addf %412, %421 : vector<1x16x16xf32>
    %c0_384 = arith.constant 0 : index
    %c40 = arith.constant 40 : index
    %423 = memref.load %arg1[%c0_384, %c40] : memref<2x49xf32, #tpu.memory_space<smem>>
    %c0_385 = arith.constant 0 : index
    %c5_386 = arith.constant 5 : index
    %c5_387 = arith.constant 5 : index
    %424 = vector.load %arg5[%c0_385, %c5_386, %c5_387] : memref<1x22x22xf32, #tpu.memory_space<vmem>>, vector<1x16x16xf32>
    %425 = vector.broadcast %423 : f32 to vector<1x16x16xf32>
    %426 = arith.mulf %425, %424 : vector<1x16x16xf32>
    %c1_388 = arith.constant 1 : index
    %c40_389 = arith.constant 40 : index
    %427 = memref.load %arg1[%c1_388, %c40_389] : memref<2x49xf32, #tpu.memory_space<smem>>
    %c0_390 = arith.constant 0 : index
    %c5_391 = arith.constant 5 : index
    %c5_392 = arith.constant 5 : index
    %428 = vector.load %arg6[%c0_390, %c5_391, %c5_392] : memref<1x22x22xf32, #tpu.memory_space<vmem>>, vector<1x16x16xf32>
    %429 = vector.broadcast %427 : f32 to vector<1x16x16xf32>
    %430 = arith.mulf %429, %428 : vector<1x16x16xf32>
    %431 = arith.addf %426, %430 : vector<1x16x16xf32>
    %432 = arith.addf %422, %431 : vector<1x16x16xf32>
    %c0_393 = arith.constant 0 : index
    %c41 = arith.constant 41 : index
    %433 = memref.load %arg1[%c0_393, %c41] : memref<2x49xf32, #tpu.memory_space<smem>>
    %c0_394 = arith.constant 0 : index
    %c5_395 = arith.constant 5 : index
    %c6_396 = arith.constant 6 : index
    %434 = vector.load %arg5[%c0_394, %c5_395, %c6_396] : memref<1x22x22xf32, #tpu.memory_space<vmem>>, vector<1x16x16xf32>
    %435 = vector.broadcast %433 : f32 to vector<1x16x16xf32>
    %436 = arith.mulf %435, %434 : vector<1x16x16xf32>
    %c1_397 = arith.constant 1 : index
    %c41_398 = arith.constant 41 : index
    %437 = memref.load %arg1[%c1_397, %c41_398] : memref<2x49xf32, #tpu.memory_space<smem>>
    %c0_399 = arith.constant 0 : index
    %c5_400 = arith.constant 5 : index
    %c6_401 = arith.constant 6 : index
    %438 = vector.load %arg6[%c0_399, %c5_400, %c6_401] : memref<1x22x22xf32, #tpu.memory_space<vmem>>, vector<1x16x16xf32>
    %439 = vector.broadcast %437 : f32 to vector<1x16x16xf32>
    %440 = arith.mulf %439, %438 : vector<1x16x16xf32>
    %441 = arith.addf %436, %440 : vector<1x16x16xf32>
    %442 = arith.addf %432, %441 : vector<1x16x16xf32>
    %c0_402 = arith.constant 0 : index
    %c42 = arith.constant 42 : index
    %443 = memref.load %arg1[%c0_402, %c42] : memref<2x49xf32, #tpu.memory_space<smem>>
    %c0_403 = arith.constant 0 : index
    %c6_404 = arith.constant 6 : index
    %c0_405 = arith.constant 0 : index
    %444 = vector.load %arg5[%c0_403, %c6_404, %c0_405] : memref<1x22x22xf32, #tpu.memory_space<vmem>>, vector<1x16x16xf32>
    %445 = vector.broadcast %443 : f32 to vector<1x16x16xf32>
    %446 = arith.mulf %445, %444 : vector<1x16x16xf32>
    %c1_406 = arith.constant 1 : index
    %c42_407 = arith.constant 42 : index
    %447 = memref.load %arg1[%c1_406, %c42_407] : memref<2x49xf32, #tpu.memory_space<smem>>
    %c0_408 = arith.constant 0 : index
    %c6_409 = arith.constant 6 : index
    %c0_410 = arith.constant 0 : index
    %448 = vector.load %arg6[%c0_408, %c6_409, %c0_410] : memref<1x22x22xf32, #tpu.memory_space<vmem>>, vector<1x16x16xf32>
    %449 = vector.broadcast %447 : f32 to vector<1x16x16xf32>
    %450 = arith.mulf %449, %448 : vector<1x16x16xf32>
    %451 = arith.addf %446, %450 : vector<1x16x16xf32>
    %452 = arith.addf %442, %451 : vector<1x16x16xf32>
    %c0_411 = arith.constant 0 : index
    %c43 = arith.constant 43 : index
    %453 = memref.load %arg1[%c0_411, %c43] : memref<2x49xf32, #tpu.memory_space<smem>>
    %c0_412 = arith.constant 0 : index
    %c6_413 = arith.constant 6 : index
    %c1_414 = arith.constant 1 : index
    %454 = vector.load %arg5[%c0_412, %c6_413, %c1_414] : memref<1x22x22xf32, #tpu.memory_space<vmem>>, vector<1x16x16xf32>
    %455 = vector.broadcast %453 : f32 to vector<1x16x16xf32>
    %456 = arith.mulf %455, %454 : vector<1x16x16xf32>
    %c1_415 = arith.constant 1 : index
    %c43_416 = arith.constant 43 : index
    %457 = memref.load %arg1[%c1_415, %c43_416] : memref<2x49xf32, #tpu.memory_space<smem>>
    %c0_417 = arith.constant 0 : index
    %c6_418 = arith.constant 6 : index
    %c1_419 = arith.constant 1 : index
    %458 = vector.load %arg6[%c0_417, %c6_418, %c1_419] : memref<1x22x22xf32, #tpu.memory_space<vmem>>, vector<1x16x16xf32>
    %459 = vector.broadcast %457 : f32 to vector<1x16x16xf32>
    %460 = arith.mulf %459, %458 : vector<1x16x16xf32>
    %461 = arith.addf %456, %460 : vector<1x16x16xf32>
    %462 = arith.addf %452, %461 : vector<1x16x16xf32>
    %c0_420 = arith.constant 0 : index
    %c44 = arith.constant 44 : index
    %463 = memref.load %arg1[%c0_420, %c44] : memref<2x49xf32, #tpu.memory_space<smem>>
    %c0_421 = arith.constant 0 : index
    %c6_422 = arith.constant 6 : index
    %c2_423 = arith.constant 2 : index
    %464 = vector.load %arg5[%c0_421, %c6_422, %c2_423] : memref<1x22x22xf32, #tpu.memory_space<vmem>>, vector<1x16x16xf32>
    %465 = vector.broadcast %463 : f32 to vector<1x16x16xf32>
    %466 = arith.mulf %465, %464 : vector<1x16x16xf32>
    %c1_424 = arith.constant 1 : index
    %c44_425 = arith.constant 44 : index
    %467 = memref.load %arg1[%c1_424, %c44_425] : memref<2x49xf32, #tpu.memory_space<smem>>
    %c0_426 = arith.constant 0 : index
    %c6_427 = arith.constant 6 : index
    %c2_428 = arith.constant 2 : index
    %468 = vector.load %arg6[%c0_426, %c6_427, %c2_428] : memref<1x22x22xf32, #tpu.memory_space<vmem>>, vector<1x16x16xf32>
    %469 = vector.broadcast %467 : f32 to vector<1x16x16xf32>
    %470 = arith.mulf %469, %468 : vector<1x16x16xf32>
    %471 = arith.addf %466, %470 : vector<1x16x16xf32>
    %472 = arith.addf %462, %471 : vector<1x16x16xf32>
    %c0_429 = arith.constant 0 : index
    %c45 = arith.constant 45 : index
    %473 = memref.load %arg1[%c0_429, %c45] : memref<2x49xf32, #tpu.memory_space<smem>>
    %c0_430 = arith.constant 0 : index
    %c6_431 = arith.constant 6 : index
    %c3_432 = arith.constant 3 : index
    %474 = vector.load %arg5[%c0_430, %c6_431, %c3_432] : memref<1x22x22xf32, #tpu.memory_space<vmem>>, vector<1x16x16xf32>
    %475 = vector.broadcast %473 : f32 to vector<1x16x16xf32>
    %476 = arith.mulf %475, %474 : vector<1x16x16xf32>
    %c1_433 = arith.constant 1 : index
    %c45_434 = arith.constant 45 : index
    %477 = memref.load %arg1[%c1_433, %c45_434] : memref<2x49xf32, #tpu.memory_space<smem>>
    %c0_435 = arith.constant 0 : index
    %c6_436 = arith.constant 6 : index
    %c3_437 = arith.constant 3 : index
    %478 = vector.load %arg6[%c0_435, %c6_436, %c3_437] : memref<1x22x22xf32, #tpu.memory_space<vmem>>, vector<1x16x16xf32>
    %479 = vector.broadcast %477 : f32 to vector<1x16x16xf32>
    %480 = arith.mulf %479, %478 : vector<1x16x16xf32>
    %481 = arith.addf %476, %480 : vector<1x16x16xf32>
    %482 = arith.addf %472, %481 : vector<1x16x16xf32>
    %c0_438 = arith.constant 0 : index
    %c46 = arith.constant 46 : index
    %483 = memref.load %arg1[%c0_438, %c46] : memref<2x49xf32, #tpu.memory_space<smem>>
    %c0_439 = arith.constant 0 : index
    %c6_440 = arith.constant 6 : index
    %c4_441 = arith.constant 4 : index
    %484 = vector.load %arg5[%c0_439, %c6_440, %c4_441] : memref<1x22x22xf32, #tpu.memory_space<vmem>>, vector<1x16x16xf32>
    %485 = vector.broadcast %483 : f32 to vector<1x16x16xf32>
    %486 = arith.mulf %485, %484 : vector<1x16x16xf32>
    %c1_442 = arith.constant 1 : index
    %c46_443 = arith.constant 46 : index
    %487 = memref.load %arg1[%c1_442, %c46_443] : memref<2x49xf32, #tpu.memory_space<smem>>
    %c0_444 = arith.constant 0 : index
    %c6_445 = arith.constant 6 : index
    %c4_446 = arith.constant 4 : index
    %488 = vector.load %arg6[%c0_444, %c6_445, %c4_446] : memref<1x22x22xf32, #tpu.memory_space<vmem>>, vector<1x16x16xf32>
    %489 = vector.broadcast %487 : f32 to vector<1x16x16xf32>
    %490 = arith.mulf %489, %488 : vector<1x16x16xf32>
    %491 = arith.addf %486, %490 : vector<1x16x16xf32>
    %492 = arith.addf %482, %491 : vector<1x16x16xf32>
    %c0_447 = arith.constant 0 : index
    %c47 = arith.constant 47 : index
    %493 = memref.load %arg1[%c0_447, %c47] : memref<2x49xf32, #tpu.memory_space<smem>>
    %c0_448 = arith.constant 0 : index
    %c6_449 = arith.constant 6 : index
    %c5_450 = arith.constant 5 : index
    %494 = vector.load %arg5[%c0_448, %c6_449, %c5_450] : memref<1x22x22xf32, #tpu.memory_space<vmem>>, vector<1x16x16xf32>
    %495 = vector.broadcast %493 : f32 to vector<1x16x16xf32>
    %496 = arith.mulf %495, %494 : vector<1x16x16xf32>
    %c1_451 = arith.constant 1 : index
    %c47_452 = arith.constant 47 : index
    %497 = memref.load %arg1[%c1_451, %c47_452] : memref<2x49xf32, #tpu.memory_space<smem>>
    %c0_453 = arith.constant 0 : index
    %c6_454 = arith.constant 6 : index
    %c5_455 = arith.constant 5 : index
    %498 = vector.load %arg6[%c0_453, %c6_454, %c5_455] : memref<1x22x22xf32, #tpu.memory_space<vmem>>, vector<1x16x16xf32>
    %499 = vector.broadcast %497 : f32 to vector<1x16x16xf32>
    %500 = arith.mulf %499, %498 : vector<1x16x16xf32>
    %501 = arith.addf %496, %500 : vector<1x16x16xf32>
    %502 = arith.addf %492, %501 : vector<1x16x16xf32>
    %c0_456 = arith.constant 0 : index
    %c48 = arith.constant 48 : index
    %503 = memref.load %arg1[%c0_456, %c48] : memref<2x49xf32, #tpu.memory_space<smem>>
    %c0_457 = arith.constant 0 : index
    %c6_458 = arith.constant 6 : index
    %c6_459 = arith.constant 6 : index
    %504 = vector.load %arg5[%c0_457, %c6_458, %c6_459] : memref<1x22x22xf32, #tpu.memory_space<vmem>>, vector<1x16x16xf32>
    %505 = vector.broadcast %503 : f32 to vector<1x16x16xf32>
    %506 = arith.mulf %505, %504 : vector<1x16x16xf32>
    %c1_460 = arith.constant 1 : index
    %c48_461 = arith.constant 48 : index
    %507 = memref.load %arg1[%c1_460, %c48_461] : memref<2x49xf32, #tpu.memory_space<smem>>
    %c0_462 = arith.constant 0 : index
    %c6_463 = arith.constant 6 : index
    %c6_464 = arith.constant 6 : index
    %508 = vector.load %arg6[%c0_462, %c6_463, %c6_464] : memref<1x22x22xf32, #tpu.memory_space<vmem>>, vector<1x16x16xf32>
    %509 = vector.broadcast %507 : f32 to vector<1x16x16xf32>
    %510 = arith.mulf %509, %508 : vector<1x16x16xf32>
    %511 = arith.addf %506, %510 : vector<1x16x16xf32>
    %512 = arith.addf %502, %511 : vector<1x16x16xf32>
    %cst_465 = arith.constant 0.000000e+00 : f32
    %513 = vector.broadcast %cst_465 : f32 to vector<1x16x16xf32>
    %514 = arith.subf %513, %512 : vector<1x16x16xf32>
    %515 = math.exp %514 : vector<1x16x16xf32>
    %cst_466 = arith.constant 1.000000e+00 : f32
    %516 = vector.broadcast %cst_466 : f32 to vector<1x16x16xf32>
    %517 = arith.addf %516, %515 : vector<1x16x16xf32>
    %518 = tpu.reciprocal %517 : vector<1x16x16xf32> -> vector<1x16x16xf32>
    %c0_467 = arith.constant 0 : index
    %c0_468 = arith.constant 0 : index
    %c0_469 = arith.constant 0 : index
    %c0_470 = arith.constant 0 : index
    %519 = vector.load %arg3[%c0_467, %c0_468, %c0_469, %c0_470] : memref<1x4x16x16xf32, #tpu.memory_space<vmem>>, vector<1x1x16x16xf32>
    %520 = vector.shape_cast %519 : vector<1x1x16x16xf32> to vector<1x16x16xf32>
    %521 = arith.mulf %520, %518 : vector<1x16x16xf32>
    %c0_471 = arith.constant 0 : index
    %c0_472 = arith.constant 0 : index
    %c0_473 = arith.constant 0 : index
    %c0_474 = arith.constant 0 : index
    %522 = vector.load %arg4[%c0_471, %c0_472, %c0_473, %c0_474] : memref<1x4x16x16xf32, #tpu.memory_space<vmem>>, vector<1x1x16x16xf32>
    %523 = vector.shape_cast %522 : vector<1x1x16x16xf32> to vector<1x16x16xf32>
    %524 = vector.shape_cast %521 : vector<1x16x16xf32> to vector<1x1x16x16xf32>
    tpu.vector_store %arg4[%c0_471, %c0_472, %c0_473, %c0_474], %524 {strides = array<i32>} : memref<1x4x16x16xf32, #tpu.memory_space<vmem>>, vector<1x1x16x16xf32>,
    %c0_475 = arith.constant 0 : index
    %c1_476 = arith.constant 1 : index
    %c0_477 = arith.constant 0 : index
    %c0_478 = arith.constant 0 : index
    %525 = vector.load %arg3[%c0_475, %c1_476, %c0_477, %c0_478] : memref<1x4x16x16xf32, #tpu.memory_space<vmem>>, vector<1x1x16x16xf32>
    %526 = vector.shape_cast %525 : vector<1x1x16x16xf32> to vector<1x16x16xf32>
    %527 = arith.mulf %526, %518 : vector<1x16x16xf32>
    %c0_479 = arith.constant 0 : index
    %c1_480 = arith.constant 1 : index
    %c0_481 = arith.constant 0 : index
    %c0_482 = arith.constant 0 : index
    %528 = vector.load %arg4[%c0_479, %c1_480, %c0_481, %c0_482] : memref<1x4x16x16xf32, #tpu.memory_space<vmem>>, vector<1x1x16x16xf32>
    %529 = vector.shape_cast %528 : vector<1x1x16x16xf32> to vector<1x16x16xf32>
    %530 = vector.shape_cast %527 : vector<1x16x16xf32> to vector<1x1x16x16xf32>
    tpu.vector_store %arg4[%c0_479, %c1_480, %c0_481, %c0_482], %530 {strides = array<i32>} : memref<1x4x16x16xf32, #tpu.memory_space<vmem>>, vector<1x1x16x16xf32>,
    %c0_483 = arith.constant 0 : index
    %c2_484 = arith.constant 2 : index
    %c0_485 = arith.constant 0 : index
    %c0_486 = arith.constant 0 : index
    %531 = vector.load %arg3[%c0_483, %c2_484, %c0_485, %c0_486] : memref<1x4x16x16xf32, #tpu.memory_space<vmem>>, vector<1x1x16x16xf32>
    %532 = vector.shape_cast %531 : vector<1x1x16x16xf32> to vector<1x16x16xf32>
    %533 = arith.mulf %532, %518 : vector<1x16x16xf32>
    %c0_487 = arith.constant 0 : index
    %c2_488 = arith.constant 2 : index
    %c0_489 = arith.constant 0 : index
    %c0_490 = arith.constant 0 : index
    %534 = vector.load %arg4[%c0_487, %c2_488, %c0_489, %c0_490] : memref<1x4x16x16xf32, #tpu.memory_space<vmem>>, vector<1x1x16x16xf32>
    %535 = vector.shape_cast %534 : vector<1x1x16x16xf32> to vector<1x16x16xf32>
    %536 = vector.shape_cast %533 : vector<1x16x16xf32> to vector<1x1x16x16xf32>
    tpu.vector_store %arg4[%c0_487, %c2_488, %c0_489, %c0_490], %536 {strides = array<i32>} : memref<1x4x16x16xf32, #tpu.memory_space<vmem>>, vector<1x1x16x16xf32>,
    %c0_491 = arith.constant 0 : index
    %c3_492 = arith.constant 3 : index
    %c0_493 = arith.constant 0 : index
    %c0_494 = arith.constant 0 : index
    %537 = vector.load %arg3[%c0_491, %c3_492, %c0_493, %c0_494] : memref<1x4x16x16xf32, #tpu.memory_space<vmem>>, vector<1x1x16x16xf32>
    %538 = vector.shape_cast %537 : vector<1x1x16x16xf32> to vector<1x16x16xf32>
    %539 = arith.mulf %538, %518 : vector<1x16x16xf32>
    %c0_495 = arith.constant 0 : index
    %c3_496 = arith.constant 3 : index
    %c0_497 = arith.constant 0 : index
    %c0_498 = arith.constant 0 : index
    %540 = vector.load %arg4[%c0_495, %c3_496, %c0_497, %c0_498] : memref<1x4x16x16xf32, #tpu.memory_space<vmem>>, vector<1x1x16x16xf32>
    %541 = vector.shape_cast %540 : vector<1x1x16x16xf32> to vector<1x16x16xf32>
    %542 = vector.shape_cast %539 : vector<1x16x16xf32> to vector<1x1x16x16xf32>
    tpu.vector_store %arg4[%c0_495, %c3_496, %c0_497, %c0_498], %542 {strides = array<i32>} : memref<1x4x16x16xf32, #tpu.memory_space<vmem>>, vector<1x1x16x16xf32>,
    return
  }
  func.func @transform_0(%arg0: i32) -> (i32, i32) {
    %c0_i32 = arith.constant 0 : i32
    %c0_i32_0 = arith.constant 0 : i32
    %c0_i32_1 = arith.constant 0 : i32
    return %c0_i32, %c0_i32_0 : i32, i32
  }
  func.func @transform_1(%arg0: i32) -> i32 {
    %c0_i32 = arith.constant 0 : i32
    %c0_i32_0 = arith.constant 0 : i32
    return %c0_i32 : i32
  }
  func.func @transform_2(%arg0: i32) -> (i32, i32, i32, i32) {
    %c0_i32 = arith.constant 0 : i32
    %c0_i32_0 = arith.constant 0 : i32
    %c0_i32_1 = arith.constant 0 : i32
    %c0_i32_2 = arith.constant 0 : i32
    return %arg0, %c0_i32, %c0_i32_0, %c0_i32_1 : i32, i32, i32, i32
  }
  func.func @transform_3(%arg0: i32) -> (i32, i32, i32, i32) {
    %c0_i32 = arith.constant 0 : i32
    %c0_i32_0 = arith.constant 0 : i32
    %c0_i32_1 = arith.constant 0 : i32
    %c0_i32_2 = arith.constant 0 : i32
    return %arg0, %c0_i32, %c0_i32_0, %c0_i32_1 : i32, i32, i32, i32
  }
}

</mosaic_0001>

<llo_original>
// kernel: tpu_custom_call.1
$region0: #{tpu_custom_call.1}
  #allocation0 [shape = 'u32[]', space=smem, size = 0x4, offset = 0x4, fixed_abs, tag = 'smem constant byte address 0x4 - core index']
  #allocation1 [shape = 'u32[144,128]{1,0:T(1,128)}', space=vmem, size = 0x12000, scoped, tag = 'internal scratch']
  #allocation2 [shape = 'f32[1,22,22]{2,1,0:T(8,128)}', space=vmem, size = 0x3000, scoped, tag = 'scratch operand']
  #allocation3 [shape = 'f32[1,22,22]{2,1,0:T(8,128)}', space=vmem, size = 0x3000, scoped, tag = 'scratch operand']
  #allocation4 [shape = 'f32[1]{0:T(128)S(6)}', space=smem, size = 0x200, scoped, tag = 'scoped memory for tpu_custom_call.1']
  %s0 = inlined_call_operand.vmem [shape: f32[2,49], index: 0, kind: input, shape index: {}]
  %s1 = inlined_call_operand.<no memory space> [shape: f32[1], index: 1, kind: input, shape index: {}]
  %s2 = inlined_call_operand.hbm [shape: f32[2,4,16,16], index: 2, kind: input, shape index: {}]
  %s3 = inlined_call_operand.hbm [shape: f32[2,4,16,16], index: 3, kind: output, shape index: {}]
  %s4 = sld [smem:[#allocation0]]
  $region57: #{tpu_custom_call.1} parent=0
    _
  %s6 = ssub.s32 1, %s4
  %s7 = scalar_select 0, %s6, %s4
  %8 = sst [smem:[#allocation4]] %s1
  $region1: #{tpu_custom_call.1} parent=0
    #allocation5 [shape = 'u8[1024]{0}', space=smem, size = 0x400, scoped, tag = 'input window, operand 0, single buffered']
    #allocation6 [shape = 's32[2]{0}', space=sflag, size = 0x8, scoped, tag = 'scoped memory for tpu_custom_call.1']
    #allocation7 [shape = 's32[2]{0}', space=sflag, size = 0x8, scoped, tag = 'scoped memory for tpu_custom_call.1']
    #allocation8 [shape = 's32[2]{0}', space=sflag, size = 0x8, scoped, tag = 'scoped memory for tpu_custom_call.1']
    #allocation9 [shape = 'u8[65536]{0}', space=vmem, size = 0x10000, scoped, tag = 'input window, operand 2']
    #allocation10 [shape = 'u8[65536]{0}', space=vmem, size = 0x10000, scoped, tag = 'output window, operand 0']
    %9 = vsyncpa [#allocation8], 0
    %10 = vsyncpa [#allocation6], 0
    %s11 = scalar_lea.sflag [#allocation6], 1
    %12 = vsyncpa %s11, 0
    %13 = vsyncpa [#allocation7], 0
    %s14 = scalar_lea.sflag [#allocation7], 1
    %15 = vsyncpa %s14, 0
    loop: start=0, step=1, limit=4
    $region2: #{tpu_custom_call.1} parent=1 // loop_pre_header
      _
    $region3: #{tpu_custom_call.1} parent=1 // loop_header
      %s17 = sphi 0, %s21
      %p18 = scmp.ge.s32.totalorder %s17, 4
      %s25 = sphi 0, %s25
      %s27 = sphi 0, %s25
      %s28 = sphi 0, %s27
      %s42 = sphi 0, %s28
      %s46 = sphi 0, %s46
      %s48 = sphi 0, %s46
      %s49 = sphi 0, %s48
      %s63 = sphi 0, %s49
      %s69 = sphi 0, %s71
      %s72 = sphi 0, %s69
      %s73 = sphi 0, %s72
      %s89 = sphi 0, %s73
      %s95 = sphi 0, %s97
      %s98 = sphi 0, %s95
      %s99 = sphi 0, %s98
      %s115 = sphi 0, %s99
    $region4: #{tpu_custom_call.1} parent=1 // loop_header_branch
      %20 = sbr.rel (%p18) target = $region8
    $region5: #{tpu_custom_call.1} parent=1 // loop_body
      %s22 = ssub.s32 %s17, 1
      %s23 = ssub.s32 %s17, 2
      %s24 = sadd.s32 %s17, 1
      %s26 = sadd.s32 %s25, 1
      %p29 = scmp.eq.s32.totalorder %s17, 1
      %p30 = scmp.ne.s32.totalorder %s25, %s27
      %p31 = scmp.eq.s32.totalorder %s17, 0
      %p32 = por %p30, %p31
      %p33 = scmp.ne.s32.totalorder %s25, %s27
      %p34 = scmp.eq.s32.totalorder %s22, 1
      %p35 = por %p33, %p34
      %p36 = scmp.ne.s32.totalorder %s27, %s28
      %p37 = scmp.eq.s32.totalorder %s22, 0
      %p38 = por %p36, %p37
      %p39 = scmp.ne.s32.totalorder %s27, %s28
      %p40 = scmp.eq.s32.totalorder %s23, 1
      %p41 = por %p39, %p40
      %p43 = scmp.ne.s32.totalorder %s28, %s42
      %p44 = scmp.eq.s32.totalorder %s23, 0
      %p45 = por %p43, %p44
      %s47 = sadd.s32 %s46, 1
      %p50 = scmp.eq.s32.totalorder %s17, 1
      %p51 = scmp.ne.s32.totalorder %s46, %s48
      %p52 = scmp.eq.s32.totalorder %s17, 0
      %p53 = por %p51, %p52
      %p54 = scmp.ne.s32.totalorder %s46, %s48
      %p55 = scmp.eq.s32.totalorder %s22, 1
      %p56 = por %p54, %p55
      %p57 = scmp.ne.s32.totalorder %s48, %s49
      %p58 = scmp.eq.s32.totalorder %s22, 0
      %p59 = por %p57, %p58
      %p60 = scmp.ne.s32.totalorder %s48, %s49
      %p61 = scmp.eq.s32.totalorder %s23, 1
      %p62 = por %p60, %p61
      %p64 = scmp.ne.s32.totalorder %s49, %s63
      %p65 = scmp.eq.s32.totalorder %s23, 0
      %p66 = por %p64, %p65
      %s67 = ssub.s32 %s17, %s24
      %p68 = scmp.eq.s32.totalorder %s67, 0
      %s70 = sadd.s32 %s69, 1
      %s71 = scalar_select %p68, %s69, %s70
      %p74 = pneg %p68
      %p75 = scmp.eq.s32.totalorder %s17, 1
      %p76 = por %p74, %p75
      %p77 = scmp.ne.s32.totalorder %s69, %s72
      %p78 = scmp.eq.s32.totalorder %s17, 0
      %p79 = por %p77, %p78
      %p80 = scmp.ne.s32.totalorder %s69, %s72
      %p81 = scmp.eq.s32.totalorder %s22, 1
      %p82 = por %p80, %p81
      %p83 = scmp.ne.s32.totalorder %s72, %s73
      %p84 = scmp.eq.s32.totalorder %s22, 0
      %p85 = por %p83, %p84
      %p86 = scmp.ne.s32.totalorder %s72, %s73
      %p87 = scmp.eq.s32.totalorder %s23, 1
      %p88 = por %p86, %p87
      %p90 = scmp.ne.s32.totalorder %s73, %s89
      %p91 = scmp.eq.s32.totalorder %s23, 0
      %p92 = por %p90, %p91
      %s93 = ssub.s32 %s17, %s24
      %p94 = scmp.eq.s32.totalorder %s93, 0
      %s96 = sadd.s32 %s95, 1
      %s97 = scalar_select %p94, %s95, %s96
      %p100 = pneg %p94
      %p101 = scmp.eq.s32.totalorder %s17, 1
      %p102 = por %p100, %p101
      %p103 = scmp.ne.s32.totalorder %s95, %s98
      %p104 = scmp.eq.s32.totalorder %s17, 0
      %p105 = por %p103, %p104
      %p106 = scmp.ne.s32.totalorder %s95, %s98
      %p107 = scmp.eq.s32.totalorder %s22, 1
      %p108 = por %p106, %p107
      %p109 = scmp.ne.s32.totalorder %s98, %s99
      %p110 = scmp.eq.s32.totalorder %s22, 0
      %p111 = por %p109, %p110
      %p112 = scmp.ne.s32.totalorder %s98, %s99
      %p113 = scmp.eq.s32.totalorder %s23, 1
      %p114 = por %p112, %p113
      %p116 = scmp.ne.s32.totalorder %s99, %s115
      %p117 = scmp.eq.s32.totalorder %s23, 0
      %p118 = por %p116, %p117
      %p119 = scmp.le.s32.totalorder 1, %s17
      %p120 = scmp.lt.s32.totalorder %s17, 3
      %p121 = pnand %p119, %p120
      %p122 = pneg %p121
      // Predicated region
      $region9: #{tpu_custom_call.1} parent=5 // pred_check
        _
      $region10: #{tpu_custom_call.1} parent=5 // pred_check_branch
        %124 = sbr.rel (%p121) target = $region12
      $region11: #{tpu_custom_call.1} parent=5 // pred_region
        %s125 = ssub.s32 %s17, 1
        // Predicated region
        $region13: #{tpu_custom_call.1} parent=11 // pred_check
          %p126 = pneg %p38
        $region14: #{tpu_custom_call.1} parent=11 // pred_check_branch
          %128 = sbr.rel (%p126) target = $region16
        $region15: #{tpu_custom_call.1} parent=11 // pred_region
          %s130 = ssub.s32 32, 32
          %131 = vsyncadd [#allocation8], %s130
          %s133 = sshll.u32 %s0, 4
          %s134 = int_to_ptr.vmem [resolvable:$true] %s133
          %136 = dma.vmem_to_smem %s134, 32, [#allocation5], [#allocation8]
        $region16: #{tpu_custom_call.1} parent=11 // pred_fallthru
          _
        // Predicated region
        $region17: #{tpu_custom_call.1} parent=11 // pred_check
          %p137 = pneg %p59
        $region18: #{tpu_custom_call.1} parent=11 // pred_check_branch
          %139 = sbr.rel (%p137) target = $region20
        $region19: #{tpu_custom_call.1} parent=11 // pred_region
          _
        $region20: #{tpu_custom_call.1} parent=11 // pred_fallthru
          _
      $region12: #{tpu_custom_call.1} parent=5 // pred_fallthru
        _
      %p140 = scmp.lt.s32.totalorder %s17, 2
      // Predicated region
      $region21: #{tpu_custom_call.1} parent=5 // pred_check
        %p141 = pneg %p140
      $region22: #{tpu_custom_call.1} parent=5 // pred_check_branch
        %143 = sbr.rel (%p141) target = $region24
      $region23: #{tpu_custom_call.1} parent=5 // pred_region
        // Predicated region
        $region25: #{tpu_custom_call.1} parent=23 // pred_check
          %p144 = pneg %p79
        $region26: #{tpu_custom_call.1} parent=23 // pred_check_branch
          %146 = sbr.rel (%p144) target = $region28
        $region27: #{tpu_custom_call.1} parent=23 // pred_region
          %s147 = sand.u32 %s69, 1
          %s148 = scalar_lea.sflag [#allocation6], %s147
          %s149 = sand.u32 %s69, 1
          %s150 = smul.addr %s149, 64
          %s151 = scalar_lea.vmem [#allocation9], %s150
          %s153 = ssub.s32 1024, 1024
          %154 = vsyncadd %s148, %s153
          %s155 = smul.addr %s17, 8
          %s156 = smul.addr %s155, 128
          %s157 = scalar_lea.hbm %s2, %s156
          %s158 = sshll.u32 %s151, 4
          %s159 = int_to_ptr.vmem [resolvable:$true] %s158
          %164 = dma.hbm_to_vmem [thread:$0]  %s157, 1024, %s159, %s148, 128, 128, 8
        $region28: #{tpu_custom_call.1} parent=23 // pred_fallthru
          _
      $region24: #{tpu_custom_call.1} parent=5 // pred_fallthru
        _
      %p165 = scmp.le.s32.totalorder 1, %s17
      %p166 = scmp.lt.s32.totalorder %s17, 3
      %p167 = pnand %p165, %p166
      %p168 = pneg %p167
      // Predicated region
      $region29: #{tpu_custom_call.1} parent=5 // pred_check
        _
      $region30: #{tpu_custom_call.1} parent=5 // pred_check_branch
        %170 = sbr.rel (%p167) target = $region32
      $region31: #{tpu_custom_call.1} parent=5 // pred_region
        %s171 = ssub.s32 %s17, 1
        // Predicated region
        $region33: #{tpu_custom_call.1} parent=31 // pred_check
          %p172 = pneg %p38
        $region34: #{tpu_custom_call.1} parent=31 // pred_check_branch
          %174 = sbr.rel (%p172) target = $region36
        $region35: #{tpu_custom_call.1} parent=31 // pred_region
          %175 = dma.done [#allocation8], 32
        $region36: #{tpu_custom_call.1} parent=31 // pred_fallthru
          _
        %s176 = sand.u32 %s72, 1
        %s177 = scalar_lea.sflag [#allocation6], %s176
        %s178 = sand.u32 %s72, 1
        %s179 = smul.addr %s178, 64
        %s180 = scalar_lea.vmem [#allocation9], %s179
        // Predicated region
        $region37: #{tpu_custom_call.1} parent=31 // pred_check
          %p181 = pneg %p85
        $region38: #{tpu_custom_call.1} parent=31 // pred_check_branch
          %183 = sbr.rel (%p181) target = $region40
        $region39: #{tpu_custom_call.1} parent=31 // pred_region
          %184 = dma.done %s177, 1024
        $region40: #{tpu_custom_call.1} parent=31 // pred_fallthru
          _
        %185 = sfence
        %p186 = pneg %p38
        %p187 = pneg %p35
        %p188 = pneg %p59
        %p189 = pneg %p56
        %s190 = sand.u32 %s72, 1
        %s191 = scalar_lea.sflag [#allocation6], %s190
        %s192 = sand.u32 %s72, 1
        %s193 = smul.addr %s192, 64
        %s194 = scalar_lea.vmem [#allocation9], %s193
        %p195 = pneg %p85
        %p196 = pneg %p82
        %p197 = pneg %p111
        %p198 = pneg %p108
        %s199 = sand.u32 %s98, 1
        %s200 = scalar_lea.sflag [#allocation7], %s199
        %s201 = sand.u32 %s98, 1
        %s202 = smul.addr %s201, 64
        %s203 = scalar_lea.vmem [#allocation10], %s202
        %p204 = scmp.eq.s32.totalorder %s22, 0
        // Predicated region
        $region41: #{tpu_custom_call.1} parent=31 // pred_check
          %p205 = pneg %p204
        $region42: #{tpu_custom_call.1} parent=31 // pred_check_branch
          %207 = sbr.rel (%p205) target = $region44
        $region43: #{tpu_custom_call.1} parent=31 // pred_region
          %vm208 = vcmask 179200
          %209 = vst.msk [vmem:[#allocation2] sm:$0xff] %vm208, 0.0
          %210 = vst.msk [vmem:[#allocation2 + $0x8] sm:$0xff] %vm208, 0.0
          %vm211 = vcmask 177152
          %212 = vst.msk [vmem:[#allocation2 + $0x10] sm:$0x3f] %vm211, 0.0
          %213 = vst.msk [vmem:[#allocation3] sm:$0xff] %vm208, 0.0
          %214 = vst.msk [vmem:[#allocation3 + $0x8] sm:$0xff] %vm208, 0.0
          %215 = vst.msk [vmem:[#allocation3 + $0x10] sm:$0x3f] %vm211, 0.0
        $region44: #{tpu_custom_call.1} parent=31 // pred_fallthru
          _
        %v216 = vld [vmem:[%s180] sm:$0xff]
        %v217 = vld [vmem:[%s180 + $0x8] sm:$0xff]
        %s218 = scalar_lea.vmem %s180, 16 [#allocation9]
        %v219 = vld [vmem:[%s218] sm:$0xff]
        %v220 = vld [vmem:[%s218 + $0x8] sm:$0xff]
        %v221 = vmax.f32 %v216, %v219
        %v222 = vmax.f32 %v217, %v220
        %v223 = vadd.f32 %v216, %v219
        %v224 = vadd.f32 %v217, %v220
        %s225 = scalar_lea.vmem %s180, 32 [#allocation9]
        %v226 = vld [vmem:[%s225] sm:$0xff]
        %v227 = vld [vmem:[%s225 + $0x8] sm:$0xff]
        %v228 = vmax.f32 %v221, %v226
        %v229 = vmax.f32 %v222, %v227
        %v230 = vadd.f32 %v223, %v226
        %v231 = vadd.f32 %v224, %v227
        %s232 = scalar_lea.vmem %s180, 48 [#allocation9]
        %v233 = vld [vmem:[%s232] sm:$0xff]
        %v234 = vld [vmem:[%s232 + $0x8] sm:$0xff]
        %v235 = vmax.f32 %v228, %v233
        %v236 = vmax.f32 %v229, %v234
        %v237 = vadd.f32 %v230, %v233
        %v238 = vadd.f32 %v231, %v234
        %v239 = vmul.f32 %v237, 0.25
        %v240 = vmul.f32 %v238, 0.25
        %243 = vrot.lane.b32.xlu0 %v235, 3
        %v244 = vpop.permute.xlu0 %243
        %245 = vrot.lane.b32.xlu0 %v236, 3
        %v246 = vpop.permute.xlu0 %245
        %vm249 = vcmask 154648
        %250 = vst.msk [vmem:[#allocation2 + $0x3] sm:$0xff] %vm249, %v244
        %251 = vst.msk [vmem:[#allocation2 + $0xb] sm:$0xff] %vm249, %v246
        %254 = vrot.lane.b32.xlu0 %v239, 3
        %v255 = vpop.permute.xlu0 %254
        %256 = vrot.lane.b32.xlu0 %v240, 3
        %v257 = vpop.permute.xlu0 %256
        %260 = vst.msk [vmem:[#allocation3 + $0x3] sm:$0xff] %vm249, %v255
        %261 = vst.msk [vmem:[#allocation3 + $0xb] sm:$0xff] %vm249, %v257
        %s262 = sld [smem:[#allocation4]]
        %v263 = vstv %s262
        %s264 = sld [smem:[#allocation5]]
        %v265 = vld [vmem:[#allocation2] sm:$0xff]
        %v266 = vld [vmem:[#allocation2 + $0x8] sm:$0xff]
        %v267 = vstv %s264
        %v268 = vmul.f32 %v267, %v265
        %v269 = vmul.f32 %v267, %v266
        %s270 = sld [smem:[#allocation5 + $0x80]]
        %v271 = vld [vmem:[#allocation3] sm:$0xff]
        %v272 = vld [vmem:[#allocation3 + $0x8] sm:$0xff]
        %v273 = vstv %s270
        %v274 = vmul.f32 %v273, %v271
        %v275 = vmul.f32 %v273, %v272
        %v276 = vadd.f32 %v268, %v274
        %v277 = vadd.f32 %v269, %v275
        %v278 = vadd.f32 %v263, %v276
        %v279 = vadd.f32 %v263, %v277
        %s280 = sld [smem:[#allocation5 + $0x1]]
        %v281 = vstv %s280
        %v282 = vmul.f32 %v281, %v265
        %v283 = vmul.f32 %v281, %v266
        %s284 = sld [smem:[#allocation5 + $0x81]]
        %v285 = vstv %s284
        %v286 = vmul.f32 %v285, %v271
        %v287 = vmul.f32 %v285, %v272
        %v288 = vadd.f32 %v282, %v286
        %v289 = vadd.f32 %v283, %v287
        %292 = vrot.lane.b32.xlu0 %v288, 127
        %v293 = vpop.permute.xlu0 %292
        %294 = vrot.lane.b32.xlu0 %v289, 127
        %v295 = vpop.permute.xlu0 %294
        %v298 = vadd.f32 %v278, %v293
        %v299 = vadd.f32 %v279, %v295
        %s300 = sld [smem:[#allocation5 + $0x2]]
        %v301 = vstv %s300
        %v302 = vmul.f32 %v301, %v265
        %v303 = vmul.f32 %v301, %v266
        %s304 = sld [smem:[#allocation5 + $0x82]]
        %v305 = vstv %s304
        %v306 = vmul.f32 %v305, %v271
        %v307 = vmul.f32 %v305, %v272
        %v308 = vadd.f32 %v302, %v306
        %v309 = vadd.f32 %v303, %v307
        %312 = vrot.lane.b32.xlu0 %v308, 126
        %v313 = vpop.permute.xlu0 %312
        %314 = vrot.lane.b32.xlu0 %v309, 126
        %v315 = vpop.permute.xlu0 %314
        %v318 = vadd.f32 %v298, %v313
        %v319 = vadd.f32 %v299, %v315
        %s320 = sld [smem:[#allocation5 + $0x3]]
        %v321 = vstv %s320
        %v322 = vmul.f32 %v321, %v265
        %v323 = vmul.f32 %v321, %v266
        %s324 = sld [smem:[#allocation5 + $0x83]]
        %v325 = vstv %s324
        %v326 = vmul.f32 %v325, %v271
        %v327 = vmul.f32 %v325, %v272
        %v328 = vadd.f32 %v322, %v326
        %v329 = vadd.f32 %v323, %v327
        %332 = vrot.lane.b32.xlu0 %v328, 125
        %v333 = vpop.permute.xlu0 %332
        %334 = vrot.lane.b32.xlu0 %v329, 125
        %v335 = vpop.permute.xlu0 %334
        %v338 = vadd.f32 %v318, %v333
        %v339 = vadd.f32 %v319, %v335
        %s340 = sld [smem:[#allocation5 + $0x4]]
        %v341 = vstv %s340
        %v342 = vmul.f32 %v341, %v265
        %v343 = vmul.f32 %v341, %v266
        %s344 = sld [smem:[#allocation5 + $0x84]]
        %v345 = vstv %s344
        %v346 = vmul.f32 %v345, %v271
        %v347 = vmul.f32 %v345, %v272
        %v348 = vadd.f32 %v342, %v346
        %v349 = vadd.f32 %v343, %v347
        %352 = vrot.lane.b32.xlu0 %v348, 124
        %v353 = vpop.permute.xlu0 %352
        %354 = vrot.lane.b32.xlu0 %v349, 124
        %v355 = vpop.permute.xlu0 %354
        %v358 = vadd.f32 %v338, %v353
        %v359 = vadd.f32 %v339, %v355
        %s360 = sld [smem:[#allocation5 + $0x5]]
        %v361 = vstv %s360
        %v362 = vmul.f32 %v361, %v265
        %v363 = vmul.f32 %v361, %v266
        %s364 = sld [smem:[#allocation5 + $0x85]]
        %v365 = vstv %s364
        %v366 = vmul.f32 %v365, %v271
        %v367 = vmul.f32 %v365, %v272
        %v368 = vadd.f32 %v362, %v366
        %v369 = vadd.f32 %v363, %v367
        %372 = vrot.lane.b32.xlu0 %v368, 123
        %v373 = vpop.permute.xlu0 %372
        %374 = vrot.lane.b32.xlu0 %v369, 123
        %v375 = vpop.permute.xlu0 %374
        %v378 = vadd.f32 %v358, %v373
        %v379 = vadd.f32 %v359, %v375
        %s380 = sld [smem:[#allocation5 + $0x6]]
        %v381 = vstv %s380
        %v382 = vmul.f32 %v381, %v265
        %v383 = vmul.f32 %v381, %v266
        %s384 = sld [smem:[#allocation5 + $0x86]]
        %v385 = vstv %s384
        %v386 = vmul.f32 %v385, %v271
        %v387 = vmul.f32 %v385, %v272
        %v388 = vadd.f32 %v382, %v386
        %v389 = vadd.f32 %v383, %v387
        %392 = vrot.lane.b32.xlu0 %v388, 122
        %v393 = vpop.permute.xlu0 %392
        %394 = vrot.lane.b32.xlu0 %v389, 122
        %v395 = vpop.permute.xlu0 %394
        %v398 = vadd.f32 %v378, %v393
        %v399 = vadd.f32 %v379, %v395
        %s400 = sld [smem:[#allocation5 + $0x7]]
        %v401 = vld [vmem:[#allocation2 + $0x1] sm:$0xff]
        %v402 = vld [vmem:[#allocation2 + $0x9] sm:$0xff]
        %v403 = vstv %s400
        %v404 = vmul.f32 %v403, %v401
        %v405 = vmul.f32 %v403, %v402
        %s406 = sld [smem:[#allocation5 + $0x87]]
        %v407 = vld [vmem:[#allocation3 + $0x1] sm:$0xff]
        %v408 = vld [vmem:[#allocation3 + $0x9] sm:$0xff]
        %v409 = vstv %s406
        %v410 = vmul.f32 %v409, %v407
        %v411 = vmul.f32 %v409, %v408
        %v412 = vadd.f32 %v404, %v410
        %v413 = vadd.f32 %v405, %v411
        %v414 = vadd.f32 %v398, %v412
        %v415 = vadd.f32 %v399, %v413
        %s416 = sld [smem:[#allocation5 + $0x8]]
        %v417 = vstv %s416
        %v418 = vmul.f32 %v417, %v401
        %v419 = vmul.f32 %v417, %v402
        %s420 = sld [smem:[#allocation5 + $0x88]]
        %v421 = vstv %s420
        %v422 = vmul.f32 %v421, %v407
        %v423 = vmul.f32 %v421, %v408
        %v424 = vadd.f32 %v418, %v422
        %v425 = vadd.f32 %v419, %v423
        %428 = vrot.lane.b32.xlu0 %v424, 127
        %v429 = vpop.permute.xlu0 %428
        %430 = vrot.lane.b32.xlu0 %v425, 127
        %v431 = vpop.permute.xlu0 %430
        %v434 = vadd.f32 %v414, %v429
        %v435 = vadd.f32 %v415, %v431
        %s436 = sld [smem:[#allocation5 + $0x9]]
        %v437 = vstv %s436
        %v438 = vmul.f32 %v437, %v401
        %v439 = vmul.f32 %v437, %v402
        %s440 = sld [smem:[#allocation5 + $0x89]]
        %v441 = vstv %s440
        %v442 = vmul.f32 %v441, %v407
        %v443 = vmul.f32 %v441, %v408
        %v444 = vadd.f32 %v438, %v442
        %v445 = vadd.f32 %v439, %v443
        %448 = vrot.lane.b32.xlu0 %v444, 126
        %v449 = vpop.permute.xlu0 %448
        %450 = vrot.lane.b32.xlu0 %v445, 126
        %v451 = vpop.permute.xlu0 %450
        %v454 = vadd.f32 %v434, %v449
        %v455 = vadd.f32 %v435, %v451
        %s456 = sld [smem:[#allocation5 + $0xa]]
        %v457 = vstv %s456
        %v458 = vmul.f32 %v457, %v401
        %v459 = vmul.f32 %v457, %v402
        %s460 = sld [smem:[#allocation5 + $0x8a]]
        %v461 = vstv %s460
        %v462 = vmul.f32 %v461, %v407
        %v463 = vmul.f32 %v461, %v408
        %v464 = vadd.f32 %v458, %v462
        %v465 = vadd.f32 %v459, %v463
        %468 = vrot.lane.b32.xlu0 %v464, 125
        %v469 = vpop.permute.xlu0 %468
        %470 = vrot.lane.b32.xlu0 %v465, 125
        %v471 = vpop.permute.xlu0 %470
        %v474 = vadd.f32 %v454, %v469
        %v475 = vadd.f32 %v455, %v471
        %s476 = sld [smem:[#allocation5 + $0xb]]
        %v477 = vstv %s476
        %v478 = vmul.f32 %v477, %v401
        %v479 = vmul.f32 %v477, %v402
        %s480 = sld [smem:[#allocation5 + $0x8b]]
        %v481 = vstv %s480
        %v482 = vmul.f32 %v481, %v407
        %v483 = vmul.f32 %v481, %v408
        %v484 = vadd.f32 %v478, %v482
        %v485 = vadd.f32 %v479, %v483
        %488 = vrot.lane.b32.xlu0 %v484, 124
        %v489 = vpop.permute.xlu0 %488
        %490 = vrot.lane.b32.xlu0 %v485, 124
        %v491 = vpop.permute.xlu0 %490
        %v494 = vadd.f32 %v474, %v489
        %v495 = vadd.f32 %v475, %v491
        %s496 = sld [smem:[#allocation5 + $0xc]]
        %v497 = vstv %s496
        %v498 = vmul.f32 %v497, %v401
        %v499 = vmul.f32 %v497, %v402
        %s500 = sld [smem:[#allocation5 + $0x8c]]
        %v501 = vstv %s500
        %v502 = vmul.f32 %v501, %v407
        %v503 = vmul.f32 %v501, %v408
        %v504 = vadd.f32 %v498, %v502
        %v505 = vadd.f32 %v499, %v503
        %508 = vrot.lane.b32.xlu0 %v504, 123
        %v509 = vpop.permute.xlu0 %508
        %510 = vrot.lane.b32.xlu0 %v505, 123
        %v511 = vpop.permute.xlu0 %510
        %v514 = vadd.f32 %v494, %v509
        %v515 = vadd.f32 %v495, %v511
        %s516 = sld [smem:[#allocation5 + $0xd]]
        %v517 = vstv %s516
        %v518 = vmul.f32 %v517, %v401
        %v519 = vmul.f32 %v517, %v402
        %s520 = sld [smem:[#allocation5 + $0x8d]]
        %v521 = vstv %s520
        %v522 = vmul.f32 %v521, %v407
        %v523 = vmul.f32 %v521, %v408
        %v524 = vadd.f32 %v518, %v522
        %v525 = vadd.f32 %v519, %v523
        %528 = vrot.lane.b32.xlu0 %v524, 122
        %v529 = vpop.permute.xlu0 %528
        %530 = vrot.lane.b32.xlu0 %v525, 122
        %v531 = vpop.permute.xlu0 %530
        %v534 = vadd.f32 %v514, %v529
        %v535 = vadd.f32 %v515, %v531
        %s536 = sld [smem:[#allocation5 + $0xe]]
        %v537 = vld [vmem:[#allocation2 + $0x2] sm:$0xff]
        %v538 = vld [vmem:[#allocation2 + $0xa] sm:$0xff]
        %v539 = vstv %s536
        %v540 = vmul.f32 %v539, %v537
        %v541 = vmul.f32 %v539, %v538
        %s542 = sld [smem:[#allocation5 + $0x8e]]
        %v543 = vld [vmem:[#allocation3 + $0x2] sm:$0xff]
        %v544 = vld [vmem:[#allocation3 + $0xa] sm:$0xff]
        %v545 = vstv %s542
        %v546 = vmul.f32 %v545, %v543
        %v547 = vmul.f32 %v545, %v544
        %v548 = vadd.f32 %v540, %v546
        %v549 = vadd.f32 %v541, %v547
        %v550 = vadd.f32 %v534, %v548
        %v551 = vadd.f32 %v535, %v549
        %s552 = sld [smem:[#allocation5 + $0xf]]
        %v553 = vstv %s552
        %v554 = vmul.f32 %v553, %v537
        %v555 = vmul.f32 %v553, %v538
        %s556 = sld [smem:[#allocation5 + $0x8f]]
        %v557 = vstv %s556
        %v558 = vmul.f32 %v557, %v543
        %v559 = vmul.f32 %v557, %v544
        %v560 = vadd.f32 %v554, %v558
        %v561 = vadd.f32 %v555, %v559
        %564 = vrot.lane.b32.xlu0 %v560, 127
        %v565 = vpop.permute.xlu0 %564
        %566 = vrot.lane.b32.xlu0 %v561, 127
        %v567 = vpop.permute.xlu0 %566
        %v570 = vadd.f32 %v550, %v565
        %v571 = vadd.f32 %v551, %v567
        %s572 = sld [smem:[#allocation5 + $0x10]]
        %v573 = vstv %s572
        %v574 = vmul.f32 %v573, %v537
        %v575 = vmul.f32 %v573, %v538
        %s576 = sld [smem:[#allocation5 + $0x90]]
        %v577 = vstv %s576
        %v578 = vmul.f32 %v577, %v543
        %v579 = vmul.f32 %v577, %v544
        %v580 = vadd.f32 %v574, %v578
        %v581 = vadd.f32 %v575, %v579
        %584 = vrot.lane.b32.xlu0 %v580, 126
        %v585 = vpop.permute.xlu0 %584
        %586 = vrot.lane.b32.xlu0 %v581, 126
        %v587 = vpop.permute.xlu0 %586
        %v590 = vadd.f32 %v570, %v585
        %v591 = vadd.f32 %v571, %v587
        %s592 = sld [smem:[#allocation5 + $0x11]]
        %v593 = vstv %s592
        %v594 = vmul.f32 %v593, %v537
        %v595 = vmul.f32 %v593, %v538
        %s596 = sld [smem:[#allocation5 + $0x91]]
        %v597 = vstv %s596
        %v598 = vmul.f32 %v597, %v543
        %v599 = vmul.f32 %v597, %v544
        %v600 = vadd.f32 %v594, %v598
        %v601 = vadd.f32 %v595, %v599
        %604 = vrot.lane.b32.xlu0 %v600, 125
        %v605 = vpop.permute.xlu0 %604
        %606 = vrot.lane.b32.xlu0 %v601, 125
        %v607 = vpop.permute.xlu0 %606
        %v610 = vadd.f32 %v590, %v605
        %v611 = vadd.f32 %v591, %v607
        %s612 = sld [smem:[#allocation5 + $0x12]]
        %v613 = vstv %s612
        %v614 = vmul.f32 %v613, %v537
        %v615 = vmul.f32 %v613, %v538
        %s616 = sld [smem:[#allocation5 + $0x92]]
        %v617 = vstv %s616
        %v618 = vmul.f32 %v617, %v543
        %v619 = vmul.f32 %v617, %v544
        %v620 = vadd.f32 %v614, %v618
        %v621 = vadd.f32 %v615, %v619
        %624 = vrot.lane.b32.xlu0 %v620, 124
        %v625 = vpop.permute.xlu0 %624
        %626 = vrot.lane.b32.xlu0 %v621, 124
        %v627 = vpop.permute.xlu0 %626
        %v630 = vadd.f32 %v610, %v625
        %v631 = vadd.f32 %v611, %v627
        %s632 = sld [smem:[#allocation5 + $0x13]]
        %v633 = vstv %s632
        %v634 = vmul.f32 %v633, %v537
        %v635 = vmul.f32 %v633, %v538
        %s636 = sld [smem:[#allocation5 + $0x93]]
        %v637 = vstv %s636
        %v638 = vmul.f32 %v637, %v543
        %v639 = vmul.f32 %v637, %v544
        %v640 = vadd.f32 %v634, %v638
        %v641 = vadd.f32 %v635, %v639
        %644 = vrot.lane.b32.xlu0 %v640, 123
        %v645 = vpop.permute.xlu0 %644
        %646 = vrot.lane.b32.xlu0 %v641, 123
        %v647 = vpop.permute.xlu0 %646
        %v650 = vadd.f32 %v630, %v645
        %v651 = vadd.f32 %v631, %v647
        %s652 = sld [smem:[#allocation5 + $0x14]]
        %v653 = vstv %s652
        %v654 = vmul.f32 %v653, %v537
        %v655 = vmul.f32 %v653, %v538
        %s656 = sld [smem:[#allocation5 + $0x94]]
        %v657 = vstv %s656
        %v658 = vmul.f32 %v657, %v543
        %v659 = vmul.f32 %v657, %v544
        %v660 = vadd.f32 %v654, %v658
        %v661 = vadd.f32 %v655, %v659
        %664 = vrot.lane.b32.xlu0 %v660, 122
        %v665 = vpop.permute.xlu0 %664
        %666 = vrot.lane.b32.xlu0 %v661, 122
        %v667 = vpop.permute.xlu0 %666
        %v670 = vadd.f32 %v650, %v665
        %v671 = vadd.f32 %v651, %v667
        %s672 = sld [smem:[#allocation5 + $0x15]]
        %v673 = vld [vmem:[#allocation2 + $0x3] sm:$0xff]
        %v674 = vld [vmem:[#allocation2 + $0xb] sm:$0xff]
        %v675 = vstv %s672
        %v676 = vmul.f32 %v675, %v673
        %v677 = vmul.f32 %v675, %v674
        %s678 = sld [smem:[#allocation5 + $0x95]]
        %v679 = vld [vmem:[#allocation3 + $0x3] sm:$0xff]
        %v680 = vld [vmem:[#allocation3 + $0xb] sm:$0xff]
        %v681 = vstv %s678
        %v682 = vmul.f32 %v681, %v679
        %v683 = vmul.f32 %v681, %v680
        %v684 = vadd.f32 %v676, %v682
        %v685 = vadd.f32 %v677, %v683
        %v686 = vadd.f32 %v670, %v684
        %v687 = vadd.f32 %v671, %v685
        %s688 = sld [smem:[#allocation5 + $0x16]]
        %v689 = vstv %s688
        %v690 = vmul.f32 %v689, %v673
        %v691 = vmul.f32 %v689, %v674
        %s692 = sld [smem:[#allocation5 + $0x96]]
        %v693 = vstv %s692
        %v694 = vmul.f32 %v693, %v679
        %v695 = vmul.f32 %v693, %v680
        %v696 = vadd.f32 %v690, %v694
        %v697 = vadd.f32 %v691, %v695
        %700 = vrot.lane.b32.xlu0 %v696, 127
        %v701 = vpop.permute.xlu0 %700
        %702 = vrot.lane.b32.xlu0 %v697, 127
        %v703 = vpop.permute.xlu0 %702
        %v706 = vadd.f32 %v686, %v701
        %v707 = vadd.f32 %v687, %v703
        %s708 = sld [smem:[#allocation5 + $0x17]]
        %v709 = vstv %s708
        %v710 = vmul.f32 %v709, %v673
        %v711 = vmul.f32 %v709, %v674
        %s712 = sld [smem:[#allocation5 + $0x97]]
        %v713 = vstv %s712
        %v714 = vmul.f32 %v713, %v679
        %v715 = vmul.f32 %v713, %v680
        %v716 = vadd.f32 %v710, %v714
        %v717 = vadd.f32 %v711, %v715
        %720 = vrot.lane.b32.xlu0 %v716, 126
        %v721 = vpop.permute.xlu0 %720
        %722 = vrot.lane.b32.xlu0 %v717, 126
        %v723 = vpop.permute.xlu0 %722
        %v726 = vadd.f32 %v706, %v721
        %v727 = vadd.f32 %v707, %v723
        %s728 = sld [smem:[#allocation5 + $0x18]]
        %v729 = vstv %s728
        %v730 = vmul.f32 %v729, %v673
        %v731 = vmul.f32 %v729, %v674
        %s732 = sld [smem:[#allocation5 + $0x98]]
        %v733 = vstv %s732
        %v734 = vmul.f32 %v733, %v679
        %v735 = vmul.f32 %v733, %v680
        %v736 = vadd.f32 %v730, %v734
        %v737 = vadd.f32 %v731, %v735
        %740 = vrot.lane.b32.xlu0 %v736, 125
        %v741 = vpop.permute.xlu0 %740
        %742 = vrot.lane.b32.xlu0 %v737, 125
        %v743 = vpop.permute.xlu0 %742
        %v746 = vadd.f32 %v726, %v741
        %v747 = vadd.f32 %v727, %v743
        %s748 = sld [smem:[#allocation5 + $0x19]]
        %v749 = vstv %s748
        %v750 = vmul.f32 %v749, %v673
        %v751 = vmul.f32 %v749, %v674
        %s752 = sld [smem:[#allocation5 + $0x99]]
        %v753 = vstv %s752
        %v754 = vmul.f32 %v753, %v679
        %v755 = vmul.f32 %v753, %v680
        %v756 = vadd.f32 %v750, %v754
        %v757 = vadd.f32 %v751, %v755
        %760 = vrot.lane.b32.xlu0 %v756, 124
        %v761 = vpop.permute.xlu0 %760
        %762 = vrot.lane.b32.xlu0 %v757, 124
        %v763 = vpop.permute.xlu0 %762
        %v766 = vadd.f32 %v746, %v761
        %v767 = vadd.f32 %v747, %v763
        %s768 = sld [smem:[#allocation5 + $0x1a]]
        %v769 = vstv %s768
        %v770 = vmul.f32 %v769, %v673
        %v771 = vmul.f32 %v769, %v674
        %s772 = sld [smem:[#allocation5 + $0x9a]]
        %v773 = vstv %s772
        %v774 = vmul.f32 %v773, %v679
        %v775 = vmul.f32 %v773, %v680
        %v776 = vadd.f32 %v770, %v774
        %v777 = vadd.f32 %v771, %v775
        %780 = vrot.lane.b32.xlu0 %v776, 123
        %v781 = vpop.permute.xlu0 %780
        %782 = vrot.lane.b32.xlu0 %v777, 123
        %v783 = vpop.permute.xlu0 %782
        %v786 = vadd.f32 %v766, %v781
        %v787 = vadd.f32 %v767, %v783
        %s788 = sld [smem:[#allocation5 + $0x1b]]
        %v789 = vstv %s788
        %v790 = vmul.f32 %v789, %v673
        %v791 = vmul.f32 %v789, %v674
        %s792 = sld [smem:[#allocation5 + $0x9b]]
        %v793 = vstv %s792
        %v794 = vmul.f32 %v793, %v679
        %v795 = vmul.f32 %v793, %v680
        %v796 = vadd.f32 %v790, %v794
        %v797 = vadd.f32 %v791, %v795
        %800 = vrot.lane.b32.xlu0 %v796, 122
        %v801 = vpop.permute.xlu0 %800
        %802 = vrot.lane.b32.xlu0 %v797, 122
        %v803 = vpop.permute.xlu0 %802
        %v806 = vadd.f32 %v786, %v801
        %v807 = vadd.f32 %v787, %v803
        %s808 = sld [smem:[#allocation5 + $0x1c]]
        %v809 = vld [vmem:[#allocation2 + $0x4] sm:$0xff]
        %v810 = vld [vmem:[#allocation2 + $0xc] sm:$0xff]
        %v811 = vstv %s808
        %v812 = vmul.f32 %v811, %v809
        %v813 = vmul.f32 %v811, %v810
        %s814 = sld [smem:[#allocation5 + $0x9c]]
        %v815 = vld [vmem:[#allocation3 + $0x4] sm:$0xff]
        %v816 = vld [vmem:[#allocation3 + $0xc] sm:$0xff]
        %v817 = vstv %s814
        %v818 = vmul.f32 %v817, %v815
        %v819 = vmul.f32 %v817, %v816
        %v820 = vadd.f32 %v812, %v818
        %v821 = vadd.f32 %v813, %v819
        %v822 = vadd.f32 %v806, %v820
        %v823 = vadd.f32 %v807, %v821
        %s824 = sld [smem:[#allocation5 + $0x1d]]
        %v825 = vstv %s824
        %v826 = vmul.f32 %v825, %v809
        %v827 = vmul.f32 %v825, %v810
        %s828 = sld [smem:[#allocation5 + $0x9d]]
        %v829 = vstv %s828
        %v830 = vmul.f32 %v829, %v815
        %v831 = vmul.f32 %v829, %v816
        %v832 = vadd.f32 %v826, %v830
        %v833 = vadd.f32 %v827, %v831
        %836 = vrot.lane.b32.xlu0 %v832, 127
        %v837 = vpop.permute.xlu0 %836
        %838 = vrot.lane.b32.xlu0 %v833, 127
        %v839 = vpop.permute.xlu0 %838
        %v842 = vadd.f32 %v822, %v837
        %v843 = vadd.f32 %v823, %v839
        %s844 = sld [smem:[#allocation5 + $0x1e]]
        %v845 = vstv %s844
        %v846 = vmul.f32 %v845, %v809
        %v847 = vmul.f32 %v845, %v810
        %s848 = sld [smem:[#allocation5 + $0x9e]]
        %v849 = vstv %s848
        %v850 = vmul.f32 %v849, %v815
        %v851 = vmul.f32 %v849, %v816
        %v852 = vadd.f32 %v846, %v850
        %v853 = vadd.f32 %v847, %v851
        %856 = vrot.lane.b32.xlu0 %v852, 126
        %v857 = vpop.permute.xlu0 %856
        %858 = vrot.lane.b32.xlu0 %v853, 126
        %v859 = vpop.permute.xlu0 %858
        %v862 = vadd.f32 %v842, %v857
        %v863 = vadd.f32 %v843, %v859
        %s864 = sld [smem:[#allocation5 + $0x1f]]
        %v865 = vstv %s864
        %v866 = vmul.f32 %v865, %v809
        %v867 = vmul.f32 %v865, %v810
        %s868 = sld [smem:[#allocation5 + $0x9f]]
        %v869 = vstv %s868
        %v870 = vmul.f32 %v869, %v815
        %v871 = vmul.f32 %v869, %v816
        %v872 = vadd.f32 %v866, %v870
        %v873 = vadd.f32 %v867, %v871
        %876 = vrot.lane.b32.xlu0 %v872, 125
        %v877 = vpop.permute.xlu0 %876
        %878 = vrot.lane.b32.xlu0 %v873, 125
        %v879 = vpop.permute.xlu0 %878
        %v882 = vadd.f32 %v862, %v877
        %v883 = vadd.f32 %v863, %v879
        %s884 = sld [smem:[#allocation5 + $0x20]]
        %v885 = vstv %s884
        %v886 = vmul.f32 %v885, %v809
        %v887 = vmul.f32 %v885, %v810
        %s888 = sld [smem:[#allocation5 + $0xa0]]
        %v889 = vstv %s888
        %v890 = vmul.f32 %v889, %v815
        %v891 = vmul.f32 %v889, %v816
        %v892 = vadd.f32 %v886, %v890
        %v893 = vadd.f32 %v887, %v891
        %896 = vrot.lane.b32.xlu0 %v892, 124
        %v897 = vpop.permute.xlu0 %896
        %898 = vrot.lane.b32.xlu0 %v893, 124
        %v899 = vpop.permute.xlu0 %898
        %v902 = vadd.f32 %v882, %v897
        %v903 = vadd.f32 %v883, %v899
        %s904 = sld [smem:[#allocation5 + $0x21]]
        %v905 = vstv %s904
        %v906 = vmul.f32 %v905, %v809
        %v907 = vmul.f32 %v905, %v810
        %s908 = sld [smem:[#allocation5 + $0xa1]]
        %v909 = vstv %s908
        %v910 = vmul.f32 %v909, %v815
        %v911 = vmul.f32 %v909, %v816
        %v912 = vadd.f32 %v906, %v910
        %v913 = vadd.f32 %v907, %v911
        %916 = vrot.lane.b32.xlu0 %v912, 123
        %v917 = vpop.permute.xlu0 %916
        %918 = vrot.lane.b32.xlu0 %v913, 123
        %v919 = vpop.permute.xlu0 %918
        %v922 = vadd.f32 %v902, %v917
        %v923 = vadd.f32 %v903, %v919
        %s924 = sld [smem:[#allocation5 + $0x22]]
        %v925 = vstv %s924
        %v926 = vmul.f32 %v925, %v809
        %v927 = vmul.f32 %v925, %v810
        %s928 = sld [smem:[#allocation5 + $0xa2]]
        %v929 = vstv %s928
        %v930 = vmul.f32 %v929, %v815
        %v931 = vmul.f32 %v929, %v816
        %v932 = vadd.f32 %v926, %v930
        %v933 = vadd.f32 %v927, %v931
        %936 = vrot.lane.b32.xlu0 %v932, 122
        %v937 = vpop.permute.xlu0 %936
        %938 = vrot.lane.b32.xlu0 %v933, 122
        %v939 = vpop.permute.xlu0 %938
        %v942 = vadd.f32 %v922, %v937
        %v943 = vadd.f32 %v923, %v939
        %s944 = sld [smem:[#allocation5 + $0x23]]
        %v945 = vld [vmem:[#allocation2 + $0x5] sm:$0xff]
        %v946 = vld [vmem:[#allocation2 + $0xd] sm:$0xff]
        %v947 = vstv %s944
        %v948 = vmul.f32 %v947, %v945
        %v949 = vmul.f32 %v947, %v946
        %s950 = sld [smem:[#allocation5 + $0xa3]]
        %v951 = vld [vmem:[#allocation3 + $0x5] sm:$0xff]
        %v952 = vld [vmem:[#allocation3 + $0xd] sm:$0xff]
        %v953 = vstv %s950
        %v954 = vmul.f32 %v953, %v951
        %v955 = vmul.f32 %v953, %v952
        %v956 = vadd.f32 %v948, %v954
        %v957 = vadd.f32 %v949, %v955
        %v958 = vadd.f32 %v942, %v956
        %v959 = vadd.f32 %v943, %v957
        %s960 = sld [smem:[#allocation5 + $0x24]]
        %v961 = vstv %s960
        %v962 = vmul.f32 %v961, %v945
        %v963 = vmul.f32 %v961, %v946
        %s964 = sld [smem:[#allocation5 + $0xa4]]
        %v965 = vstv %s964
        %v966 = vmul.f32 %v965, %v951
        %v967 = vmul.f32 %v965, %v952
        %v968 = vadd.f32 %v962, %v966
        %v969 = vadd.f32 %v963, %v967
        %972 = vrot.lane.b32.xlu0 %v968, 127
        %v973 = vpop.permute.xlu0 %972
        %974 = vrot.lane.b32.xlu0 %v969, 127
        %v975 = vpop.permute.xlu0 %974
        %v978 = vadd.f32 %v958, %v973
        %v979 = vadd.f32 %v959, %v975
        %s980 = sld [smem:[#allocation5 + $0x25]]
        %v981 = vstv %s980
        %v982 = vmul.f32 %v981, %v945
        %v983 = vmul.f32 %v981, %v946
        %s984 = sld [smem:[#allocation5 + $0xa5]]
        %v985 = vstv %s984
        %v986 = vmul.f32 %v985, %v951
        %v987 = vmul.f32 %v985, %v952
        %v988 = vadd.f32 %v982, %v986
        %v989 = vadd.f32 %v983, %v987
        %992 = vrot.lane.b32.xlu0 %v988, 126
        %v993 = vpop.permute.xlu0 %992
        %994 = vrot.lane.b32.xlu0 %v989, 126
        %v995 = vpop.permute.xlu0 %994
        %v998 = vadd.f32 %v978, %v993
        %v999 = vadd.f32 %v979, %v995
        %s1000 = sld [smem:[#allocation5 + $0x26]]
        %v1001 = vstv %s1000
        %v1002 = vmul.f32 %v1001, %v945
        %v1003 = vmul.f32 %v1001, %v946
        %s1004 = sld [smem:[#allocation5 + $0xa6]]
        %v1005 = vstv %s1004
        %v1006 = vmul.f32 %v1005, %v951
        %v1007 = vmul.f32 %v1005, %v952
        %v1008 = vadd.f32 %v1002, %v1006
        %v1009 = vadd.f32 %v1003, %v1007
        %1012 = vrot.lane.b32.xlu0 %v1008, 125
        %v1013 = vpop.permute.xlu0 %1012
        %1014 = vrot.lane.b32.xlu0 %v1009, 125
        %v1015 = vpop.permute.xlu0 %1014
        %v1018 = vadd.f32 %v998, %v1013
        %v1019 = vadd.f32 %v999, %v1015
        %s1020 = sld [smem:[#allocation5 + $0x27]]
        %v1021 = vstv %s1020
        %v1022 = vmul.f32 %v1021, %v945
        %v1023 = vmul.f32 %v1021, %v946
        %s1024 = sld [smem:[#allocation5 + $0xa7]]
        %v1025 = vstv %s1024
        %v1026 = vmul.f32 %v1025, %v951
        %v1027 = vmul.f32 %v1025, %v952
        %v1028 = vadd.f32 %v1022, %v1026
        %v1029 = vadd.f32 %v1023, %v1027
        %1032 = vrot.lane.b32.xlu0 %v1028, 124
        %v1033 = vpop.permute.xlu0 %1032
        %1034 = vrot.lane.b32.xlu0 %v1029, 124
        %v1035 = vpop.permute.xlu0 %1034
        %v1038 = vadd.f32 %v1018, %v1033
        %v1039 = vadd.f32 %v1019, %v1035
        %s1040 = sld [smem:[#allocation5 + $0x28]]
        %v1041 = vstv %s1040
        %v1042 = vmul.f32 %v1041, %v945
        %v1043 = vmul.f32 %v1041, %v946
        %s1044 = sld [smem:[#allocation5 + $0xa8]]
        %v1045 = vstv %s1044
        %v1046 = vmul.f32 %v1045, %v951
        %v1047 = vmul.f32 %v1045, %v952
        %v1048 = vadd.f32 %v1042, %v1046
        %v1049 = vadd.f32 %v1043, %v1047
        %1052 = vrot.lane.b32.xlu0 %v1048, 123
        %v1053 = vpop.permute.xlu0 %1052
        %1054 = vrot.lane.b32.xlu0 %v1049, 123
        %v1055 = vpop.permute.xlu0 %1054
        %v1058 = vadd.f32 %v1038, %v1053
        %v1059 = vadd.f32 %v1039, %v1055
        %s1060 = sld [smem:[#allocation5 + $0x29]]
        %v1061 = vstv %s1060
        %v1062 = vmul.f32 %v1061, %v945
        %v1063 = vmul.f32 %v1061, %v946
        %s1064 = sld [smem:[#allocation5 + $0xa9]]
        %v1065 = vstv %s1064
        %v1066 = vmul.f32 %v1065, %v951
        %v1067 = vmul.f32 %v1065, %v952
        %v1068 = vadd.f32 %v1062, %v1066
        %v1069 = vadd.f32 %v1063, %v1067
        %1072 = vrot.lane.b32.xlu0 %v1068, 122
        %v1073 = vpop.permute.xlu0 %1072
        %1074 = vrot.lane.b32.xlu0 %v1069, 122
        %v1075 = vpop.permute.xlu0 %1074
        %v1078 = vadd.f32 %v1058, %v1073
        %v1079 = vadd.f32 %v1059, %v1075
        %s1080 = sld [smem:[#allocation5 + $0x2a]]
        %v1081 = vld [vmem:[#allocation2 + $0x6] sm:$0xff]
        %v1082 = vld [vmem:[#allocation2 + $0xe] sm:$0xff]
        %v1083 = vstv %s1080
        %v1084 = vmul.f32 %v1083, %v1081
        %v1085 = vmul.f32 %v1083, %v1082
        %s1086 = sld [smem:[#allocation5 + $0xaa]]
        %v1087 = vld [vmem:[#allocation3 + $0x6] sm:$0xff]
        %v1088 = vld [vmem:[#allocation3 + $0xe] sm:$0xff]
        %v1089 = vstv %s1086
        %v1090 = vmul.f32 %v1089, %v1087
        %v1091 = vmul.f32 %v1089, %v1088
        %v1092 = vadd.f32 %v1084, %v1090
        %v1093 = vadd.f32 %v1085, %v1091
        %v1094 = vadd.f32 %v1078, %v1092
        %v1095 = vadd.f32 %v1079, %v1093
        %s1096 = sld [smem:[#allocation5 + $0x2b]]
        %v1097 = vstv %s1096
        %v1098 = vmul.f32 %v1097, %v1081
        %v1099 = vmul.f32 %v1097, %v1082
        %s1100 = sld [smem:[#allocation5 + $0xab]]
        %v1101 = vstv %s1100
        %v1102 = vmul.f32 %v1101, %v1087
        %v1103 = vmul.f32 %v1101, %v1088
        %v1104 = vadd.f32 %v1098, %v1102
        %v1105 = vadd.f32 %v1099, %v1103
        %1108 = vrot.lane.b32.xlu0 %v1104, 127
        %v1109 = vpop.permute.xlu0 %1108
        %1110 = vrot.lane.b32.xlu0 %v1105, 127
        %v1111 = vpop.permute.xlu0 %1110
        %v1114 = vadd.f32 %v1094, %v1109
        %v1115 = vadd.f32 %v1095, %v1111
        %s1116 = sld [smem:[#allocation5 + $0x2c]]
        %v1117 = vstv %s1116
        %v1118 = vmul.f32 %v1117, %v1081
        %v1119 = vmul.f32 %v1117, %v1082
        %s1120 = sld [smem:[#allocation5 + $0xac]]
        %v1121 = vstv %s1120
        %v1122 = vmul.f32 %v1121, %v1087
        %v1123 = vmul.f32 %v1121, %v1088
        %v1124 = vadd.f32 %v1118, %v1122
        %v1125 = vadd.f32 %v1119, %v1123
        %1128 = vrot.lane.b32.xlu0 %v1124, 126
        %v1129 = vpop.permute.xlu0 %1128
        %1130 = vrot.lane.b32.xlu0 %v1125, 126
        %v1131 = vpop.permute.xlu0 %1130
        %v1134 = vadd.f32 %v1114, %v1129
        %v1135 = vadd.f32 %v1115, %v1131
        %s1136 = sld [smem:[#allocation5 + $0x2d]]
        %v1137 = vstv %s1136
        %v1138 = vmul.f32 %v1137, %v1081
        %v1139 = vmul.f32 %v1137, %v1082
        %s1140 = sld [smem:[#allocation5 + $0xad]]
        %v1141 = vstv %s1140
        %v1142 = vmul.f32 %v1141, %v1087
        %v1143 = vmul.f32 %v1141, %v1088
        %v1144 = vadd.f32 %v1138, %v1142
        %v1145 = vadd.f32 %v1139, %v1143
        %1148 = vrot.lane.b32.xlu0 %v1144, 125
        %v1149 = vpop.permute.xlu0 %1148
        %1150 = vrot.lane.b32.xlu0 %v1145, 125
        %v1151 = vpop.permute.xlu0 %1150
        %v1154 = vadd.f32 %v1134, %v1149
        %v1155 = vadd.f32 %v1135, %v1151
        %s1156 = sld [smem:[#allocation5 + $0x2e]]
        %v1157 = vstv %s1156
        %v1158 = vmul.f32 %v1157, %v1081
        %v1159 = vmul.f32 %v1157, %v1082
        %s1160 = sld [smem:[#allocation5 + $0xae]]
        %v1161 = vstv %s1160
        %v1162 = vmul.f32 %v1161, %v1087
        %v1163 = vmul.f32 %v1161, %v1088
        %v1164 = vadd.f32 %v1158, %v1162
        %v1165 = vadd.f32 %v1159, %v1163
        %1168 = vrot.lane.b32.xlu0 %v1164, 124
        %v1169 = vpop.permute.xlu0 %1168
        %1170 = vrot.lane.b32.xlu0 %v1165, 124
        %v1171 = vpop.permute.xlu0 %1170
        %v1174 = vadd.f32 %v1154, %v1169
        %v1175 = vadd.f32 %v1155, %v1171
        %s1176 = sld [smem:[#allocation5 + $0x2f]]
        %v1177 = vstv %s1176
        %v1178 = vmul.f32 %v1177, %v1081
        %v1179 = vmul.f32 %v1177, %v1082
        %s1180 = sld [smem:[#allocation5 + $0xaf]]
        %v1181 = vstv %s1180
        %v1182 = vmul.f32 %v1181, %v1087
        %v1183 = vmul.f32 %v1181, %v1088
        %v1184 = vadd.f32 %v1178, %v1182
        %v1185 = vadd.f32 %v1179, %v1183
        %1188 = vrot.lane.b32.xlu0 %v1184, 123
        %v1189 = vpop.permute.xlu0 %1188
        %1190 = vrot.lane.b32.xlu0 %v1185, 123
        %v1191 = vpop.permute.xlu0 %1190
        %v1194 = vadd.f32 %v1174, %v1189
        %v1195 = vadd.f32 %v1175, %v1191
        %s1196 = sld [smem:[#allocation5 + $0x30]]
        %v1197 = vstv %s1196
        %v1198 = vmul.f32 %v1197, %v1081
        %v1199 = vmul.f32 %v1197, %v1082
        %s1200 = sld [smem:[#allocation5 + $0xb0]]
        %v1201 = vstv %s1200
        %v1202 = vmul.f32 %v1201, %v1087
        %v1203 = vmul.f32 %v1201, %v1088
        %v1204 = vadd.f32 %v1198, %v1202
        %v1205 = vadd.f32 %v1199, %v1203
        %1208 = vrot.lane.b32.xlu0 %v1204, 122
        %v1209 = vpop.permute.xlu0 %1208
        %1210 = vrot.lane.b32.xlu0 %v1205, 122
        %v1211 = vpop.permute.xlu0 %1210
        %v1214 = vadd.f32 %v1194, %v1209
        %v1215 = vadd.f32 %v1195, %v1211
        %v1216 = vsub.f32 0.0, %v1214
        %v1217 = vsub.f32 0.0, %v1215
        %v1218 = vmul.f32 %v1216, 1.442695
        %v1219 = vpow.pop %v1218
        %v1220 = vmul.f32 %v1217, 1.442695
        %v1221 = vpow.pop %v1220
        %v1222 = vadd.f32 %v1219, 1.0
        %v1223 = vadd.f32 %v1221, 1.0
        %v1224 = vrcp.pop %v1222
        %v1225 = vrcp.pop %v1223
        %v1226 = vld [vmem:[%s180] sm:$0xff]
        %v1227 = vld [vmem:[%s180 + $0x8] sm:$0xff]
        %v1228 = vmul.f32 %v1226, %v1224
        %v1229 = vmul.f32 %v1227, %v1225
        %vm1230 = vcmask 130048
        %1231 = vst.msk [vmem:[%s203] sm:$0xff] %vm1230, %v1228
        %1232 = vst.msk [vmem:[%s203 + $0x8] sm:$0xff] %vm1230, %v1229
        %v1233 = vld [vmem:[%s218] sm:$0xff]
        %v1234 = vld [vmem:[%s218 + $0x8] sm:$0xff]
        %v1235 = vmul.f32 %v1233, %v1224
        %v1236 = vmul.f32 %v1234, %v1225
        %s1237 = scalar_lea.vmem %s203, 16 [#allocation10]
        %1238 = vst.msk [vmem:[%s1237] sm:$0xff] %vm1230, %v1235
        %1239 = vst.msk [vmem:[%s1237 + $0x8] sm:$0xff] %vm1230, %v1236
        %v1240 = vld [vmem:[%s225] sm:$0xff]
        %v1241 = vld [vmem:[%s225 + $0x8] sm:$0xff]
        %v1242 = vmul.f32 %v1240, %v1224
        %v1243 = vmul.f32 %v1241, %v1225
        %s1244 = scalar_lea.vmem %s203, 32 [#allocation10]
        %1245 = vst.msk [vmem:[%s1244] sm:$0xff] %vm1230, %v1242
        %1246 = vst.msk [vmem:[%s1244 + $0x8] sm:$0xff] %vm1230, %v1243
        %v1247 = vld [vmem:[%s232] sm:$0xff]
        %v1248 = vld [vmem:[%s232 + $0x8] sm:$0xff]
        %v1249 = vmul.f32 %v1247, %v1224
        %v1250 = vmul.f32 %v1248, %v1225
        %s1251 = scalar_lea.vmem %s203, 48 [#allocation10]
        %1252 = vst.msk [vmem:[%s1251] sm:$0xff] %vm1230, %v1249
        %1253 = vst.msk [vmem:[%s1251 + $0x8] sm:$0xff] %vm1230, %v1250
        %s1254 = sand.u32 %s98, 1
        %s1255 = scalar_lea.sflag [#allocation7], %s1254
        %s1256 = sand.u32 %s98, 1
        %s1257 = smul.addr %s1256, 64
        %s1258 = scalar_lea.vmem [#allocation10], %s1257
        // Predicated region
        $region45: #{tpu_custom_call.1} parent=31 // pred_check
          %p1259 = pneg %p108
        $region46: #{tpu_custom_call.1} parent=31 // pred_check_branch
          %1261 = sbr.rel (%p1259) target = $region48
        $region47: #{tpu_custom_call.1} parent=31 // pred_region
          %s1263 = ssub.s32 1024, 1024
          %1264 = vsyncadd %s1255, %s1263
          %s1265 = smul.addr %s22, 8
          %s1266 = smul.addr %s1265, 128
          %s1267 = scalar_lea.hbm %s3, %s1266
          %s1268 = sshll.u32 %s1258, 4
          %s1269 = int_to_ptr.vmem [resolvable:$true] %s1268
          %1274 = dma.vmem_to_hbm [thread:$0]  %s1269, 1024, %s1267, %s1255, 128, 128, 8
        $region48: #{tpu_custom_call.1} parent=31 // pred_fallthru
          _
      $region32: #{tpu_custom_call.1} parent=5 // pred_fallthru
        _
      %p1275 = scmp.le.s32.totalorder 2, %s17
      // Predicated region
      $region49: #{tpu_custom_call.1} parent=5 // pred_check
        %p1276 = pneg %p1275
      $region50: #{tpu_custom_call.1} parent=5 // pred_check_branch
        %1278 = sbr.rel (%p1276) target = $region52
      $region51: #{tpu_custom_call.1} parent=5 // pred_region
        %s1279 = ssub.s32 %s17, 2
        // Predicated region
        $region53: #{tpu_custom_call.1} parent=51 // pred_check
          %p1280 = pneg %p114
        $region54: #{tpu_custom_call.1} parent=51 // pred_check_branch
          %1282 = sbr.rel (%p1280) target = $region56
        $region55: #{tpu_custom_call.1} parent=51 // pred_region
          %s1283 = sand.u32 %s99, 1
          %s1284 = scalar_lea.sflag [#allocation7], %s1283
          %s1285 = sand.u32 %s99, 1
          %s1286 = smul.addr %s1285, 64
          %s1287 = scalar_lea.vmem [#allocation10], %s1286
          %1288 = dma.done %s1284, 1024
        $region56: #{tpu_custom_call.1} parent=51 // pred_fallthru
          _
      $region52: #{tpu_custom_call.1} parent=5 // pred_fallthru
        _
    $region6: #{tpu_custom_call.1} parent=1 // loop_footer
      %s21 = sadd.s32 1, %s17
    $region7: #{tpu_custom_call.1} parent=1 // loop_footer_branch
      %16 = sbr.rel target = $region3
    $region8: #{tpu_custom_call.1} parent=1 // loop_exit
      _
    %1289 = vsyncpa [#allocation6], 1
    %s1290 = scalar_lea.sflag [#allocation6], 1
    %1291 = vsyncpa %s1290, 1
    %1292 = vsyncpa [#allocation7], 1
    %s1293 = scalar_lea.sflag [#allocation7], 1
    %1294 = vsyncpa %s1293, 1
    %1295 = vsyncpa [#allocation8], 1
    %s1296 = scalar_lea.sflag [#allocation8], 1
    %1297 = vsyncpa %s1296, 1

</llo_original>
